<compile_context>
chip_gen: v5e
topology: v5e:2x2
jax: 0.10.0
libtpu: 0.0.40
codegen_flags: <defaults>
</compile_context>

<pallas_src>
import functools

import jax
import jax.numpy as jnp
from jax import lax
from jax.experimental import pallas as pl
from jax.experimental.pallas import tpu as pltpu


def _round_up(n, m):
    return ((n + m - 1) // m) * m


def _reorder_and_pad_gates(w, H, Hp):
    """(4H, ...) in PyTorch gate order (i,f,g,o) -> (4Hp, ...) in order (i,f,o,g),
    each gate zero-padded from H to Hp along axis 0."""
    i, f, g, o = (w[k * H:(k + 1) * H] for k in range(4))

    def pad(a):
        return jnp.pad(a, [(0, Hp - H)] + [(0, 0)] * (a.ndim - 1))

    return jnp.concatenate([pad(i), pad(f), pad(o), pad(g)], axis=0)


def _residual_lstm_kernel(x_ref,    # (Tc*Bb, Ip)   time-major chunk of x (chunk index min(c, NC-1))
                          w5_ref,   # (Ip, 5Hp)     [Wih_i|Wih_f|Wih_o|Wih_g|Wproj]^T
                          whh_ref,  # (Hp, 4Hp)     hidden->gates (i,f,o,g), transposed
                          b5_ref,   # (1, 5Hp)      [(b_ih+b_hh) reordered | b_proj]
                          y_ref,    # (Tc*Bb, Hp)   output chunk c-1 (lstm out + residual)
                          h_scr,    # (Bb, Hp)      hidden state (persists across chunks)
                          c_scr,    # (Bb, Hp)      cell state   (persists across chunks)
                          gx_scr,   # (2, Tc*Bb, 5Hp) double-buffered x-gates + residual
                          *, Tc, Bp, Hp, unroll):
    c = pl.program_id(1)
    nc = pl.num_programs(1) - 1     # number of real sequence chunks (grid has +1 drain step)

    @pl.when(c == 0)
    def _init():
        h_scr[...] = jnp.zeros_like(h_scr)
        c_scr[...] = jnp.zeros_like(c_scr)

    # ---- Phase 1 (pipelined): one MXU matmul computing the x-contribution of
    # all four gates AND the residual projection (bias folded in) for chunk c,
    # written into gx slot c%2.  Independent of the recurrence below, which
    # works on the other slot -> the compiler can hide it under Phase 2.
    @pl.when(c < nc)
    def _phase1():
        slot = c % 2
        gx_scr[slot] = (
            jnp.dot(x_ref[...], w5_ref[...], preferred_element_type=jnp.float32)
            + b5_ref[...])

    # ---- Phase 2: serial recurrence on chunk c-1 from gx slot (c-1)%2.
    # Per step: (Bb,Hp)@(Hp,4Hp) + elementwise.
    @pl.when(c > 0)
    def _phase2():
        slot = (c - 1) % 2
        gx = gx_scr.at[slot]                # (Tc*Bb, 5Hp) ref view, no load yet
        whh = whh_ref[...]                  # hoisted, loop-invariant
        mxu_dt = whh.dtype                  # bf16 if requested (any gen), else f32

        def step(t, carry):
            h, cc = carry
            row = pl.multiple_of(t * Bp, Bp)
            gx_t = gx[pl.ds(row, Bp), :]                          # (Bb, 5Hp)
            gates = gx_t[:, :4 * Hp] + jnp.dot(
                h.astype(mxu_dt), whh, preferred_element_type=jnp.float32)
            sig = jax.nn.sigmoid(gates[:, :3 * Hp])   # one wide sigmoid: i | f | o
            i_g = sig[:, 0 * Hp:1 * Hp]
            f_g = sig[:, 1 * Hp:2 * Hp]
            o_g = sig[:, 2 * Hp:3 * Hp]
            g_g = jnp.tanh(gates[:, 3 * Hp:4 * Hp])
            c_new = f_g * cc + i_g * g_g
            h_new = o_g * jnp.tanh(c_new)
            # LSTM output + residual projection; Hp multiple of 128, row offset
            # multiple of 8 -> full unmasked store.
            # TODO(synk): training-mode dropout mask on h_new is not implemented
            # (eval-mode dropout is identity).
            y_ref[pl.ds(row, Bp), :] = (h_new + gx_t[:, 4 * Hp:]).astype(y_ref.dtype)
            return (h_new, c_new)

        h_fin, c_fin = lax.fori_loop(0, Tc, step, (h_scr[...], c_scr[...]),
                                     unroll=unroll)
        h_scr[...] = h_fin
        c_scr[...] = c_fin


@functools.partial(
    jax.jit,
    static_argnames=("seq_chunk", "batch_block", "mxu_dtype", "out_dtype",
                     "weight_buffers", "vmem_limit_bytes"))
def residual_lstm_layer(x, w_ih, w_hh, b_ih, b_hh, w_proj, b_proj,
                        *, seq_chunk=32, batch_block=None,
                        mxu_dtype=jnp.float32, out_dtype=jnp.float32,
                        weight_buffers=None, vmem_limit_bytes=None):
    """x: (B, S, I) batch-first.  Returns (B, S, H) = LSTM(x) + Linear(x).

    seq_chunk       : timesteps per pipelined chunk (raise on v5e/v6e's 128 MiB VMEM).
    batch_block     : rows per batch block; set (e.g. 8/16) with B >= 16 on v7x so
                      the "parallel" batch grid axis spreads over both TensorCores.
    mxu_dtype       : matmul-operand dtype (bf16 valid on v5e/v6e/v7x); elementwise
                      gate/state math always stays f32.
    out_dtype       : y dtype (bf16 halves HBM writeback if downstream tolerates it).
    weight_buffers  : 1 -> pl.Buffered(1) on the loop-invariant weight specs
                      (v7x lever: avoids double-buffering a large Whh in 64 MiB VMEM).
    vmem_limit_bytes: override the derived VMEM budget.
    """
    B, S, I = x.shape
    H = w_hh.shape[1]

    f32 = jnp.float32
    Hp = _round_up(H, 128)                    # lane-dense gates / states / output
    Ip = _round_up(I, 128) if I >= 128 else I  # tile-aligned K dim when I is large
    Bp_total = _round_up(B, 8)                # f32 sublane tile
    if batch_block is None:
        Bb = Bp_total
    else:
        Bb = min(_round_up(batch_block, 8), Bp_total)
    NB = -(-Bp_total // Bb)
    Bp_pad = NB * Bb
    Tc = min(seq_chunk, S)                    # time steps per grid chunk
    Sp = _round_up(S, Tc)
    NC = Sp // Tc

    # unroll gated on Hp to avoid vreg spills inside the serial loop.
    unroll = min(Tc, 16) if Hp <= 256 else min(Tc, 4)

    # ---- one-time weight prep (wrapper side) -------------------------------
    w_ih_r = _reorder_and_pad_gates(w_ih.astype(f32), H, Hp)          # (4Hp, I)
    w_ih_r = jnp.pad(w_ih_r, ((0, 0), (0, Ip - I)))                   # (4Hp, Ip)
    w_hh_r = _reorder_and_pad_gates(w_hh.astype(f32), H, Hp)          # (4Hp, H)
    w_hh_r = jnp.pad(w_hh_r, ((0, 0), (0, Hp - H)))                   # (4Hp, Hp)
    b_r = _reorder_and_pad_gates((b_ih + b_hh).astype(f32), H, Hp)    # (4Hp,)
    w_pr = jnp.pad(w_proj.astype(f32), ((0, Hp - H), (0, Ip - I)))    # (Hp, Ip)
    b_pr = jnp.pad(b_proj.astype(f32), (0, Hp - H))                   # (Hp,)

    w5 = jnp.concatenate([w_ih_r, w_pr], axis=0).T                    # (Ip, 5Hp)
    b5 = jnp.concatenate([b_r, b_pr]).reshape(1, 5 * Hp)              # (1, 5Hp)
    whh = w_hh_r.T                                                    # (Hp, 4Hp)

    # ---- input: pad, go time-major per batch block, fold (time, rows) ------
    xp = jnp.pad(x.astype(f32),
                 ((0, Bp_pad - B), (0, Sp - S), (0, Ip - I)))         # (Bp_pad,Sp,Ip)
    x_tm = xp.reshape(NB, Bb, Sp, Ip).transpose(0, 2, 1, 3)           # (NB,Sp,Bb,Ip)
    x_tm = x_tm.reshape(NB, NC, Tc * Bb, Ip)                          # (NB,NC,Tc*Bb,Ip)

    # MXU operands may be bf16 on any generation; accumulation/elementwise f32.
    x_tm = x_tm.astype(mxu_dtype)
    w5 = w5.astype(mxu_dtype)
    whh = whh.astype(mxu_dtype)

    # ---- VMEM budget (derived; clamp keeps it legal on v7x's 64 MiB) -------
    if vmem_limit_bytes is None:
        mxu_b = jnp.dtype(mxu_dtype).itemsize
        out_b = jnp.dtype(out_dtype).itemsize
        wbuf = weight_buffers if weight_buffers is not None else 2
        est = (2 * Tc * Bb * Ip * mxu_b            # x, double-buffered
               + 2 * Tc * Bb * Hp * out_b          # y, double-buffered
               + 2 * Tc * Bb * 5 * Hp * 4          # gx, two pipeline slots
               + wbuf * (Ip * 5 * Hp + Hp * 4 * Hp) * mxu_b
               + wbuf * 5 * Hp * 4                 # b5
               + 2 * Bb * Hp * 4)                  # h, c
        vmem_limit_bytes = min(max(int(est * 1.5) + (4 << 20), 32 << 20), 56 << 20)

    wkw = {}
    if weight_buffers is not None:
        wkw["pipeline_mode"] = pl.Buffered(weight_buffers)

    kernel = functools.partial(_residual_lstm_kernel,
                               Tc=Tc, Bp=Bb, Hp=Hp, unroll=unroll)

    nc_last = NC - 1
    y = pl.pallas_call(
        kernel,
        out_shape=jax.ShapeDtypeStruct((NB, NC, Tc * Bb, Hp), out_dtype),
        grid_spec=pltpu.PrefetchScalarGridSpec(
            num_scalar_prefetch=0,
            # inner axis has one extra "drain" step so the last chunk's
            # recurrence runs after its Phase-1 matmul.
            grid=(NB, NC + 1),
            in_specs=[
                # x chunk c (clamped at the drain step; that DMA is unused).
                pl.BlockSpec((None, None, Tc * Bb, Ip),
                             lambda b, c: (b, jnp.minimum(c, nc_last), 0, 0)),
                pl.BlockSpec((Ip, 5 * Hp), lambda b, c: (0, 0), **wkw),      # w5
                pl.BlockSpec((Hp, 4 * Hp), lambda b, c: (0, 0), **wkw),      # whh
                pl.BlockSpec((1, 5 * Hp), lambda b, c: (0, 0), **wkw),       # b5
            ],
            # output chunk c-1 (written by Phase 2); clamped at c == 0 where
            # nothing is written yet -- the block is fully overwritten at c == 1
            # before its HBM writeback.
            out_specs=pl.BlockSpec((None, None, Tc * Bb, Hp),
                                   lambda b, c: (b, jnp.maximum(c - 1, 0), 0, 0)),
            scratch_shapes=[
                pltpu.VMEM((Bb, Hp), f32),                # h_t (persists across chunks)
                pltpu.VMEM((Bb, Hp), f32),                # c_t (persists across chunks)
                pltpu.VMEM((2, Tc * Bb, 5 * Hp), f32),    # double-buffered x-gates + residual
            ],
        ),
        compiler_params=pltpu.CompilerParams(
            # batch blocks are independent (megacore-shardable on v7x);
            # the chunk axis carries the sequential recurrence.
            dimension_semantics=("parallel", "arbitrary"),
            vmem_limit_bytes=vmem_limit_bytes,
        ),
    )(x_tm, w5, whh, b5)

    # (NB, NC, Tc*Bb, Hp) -> (NB*Bb, Sp, Hp) -> (B, S, H)
    y = y.reshape(NB, NC, Tc, Bb, Hp).transpose(0, 3, 1, 2, 4)
    y = y.reshape(NB * Bb, Sp, Hp)
    return y[:B, :S, :H]


def _reference(x, w_ih, w_hh, b_ih, b_hh, w_proj, b_proj,
               mxu_dtype=jnp.float32):
    """Pure-JAX reference of the same forward pass (eval-mode dropout).
    `mxu_dtype` casts matmul operands the same way the kernel does."""
    B, S, I = x.shape
    H = w_hh.shape[1]
    md = mxu_dtype
    x = x.astype(jnp.float32)

    residual = jnp.dot(x.astype(md), w_proj.T.astype(md),
                       preferred_element_type=jnp.float32) + b_proj
    bias = (b_ih + b_hh).astype(jnp.float32)
    wih_t = w_ih.T.astype(md)
    whh_t = w_hh.T.astype(md)

    def cell(carry, x_t):
        h, c = carry
        gates = (jnp.dot(x_t.astype(md), wih_t,
                         preferred_element_type=jnp.float32)
                 + jnp.dot(h.astype(md), whh_t,
                           preferred_element_type=jnp.float32)
                 + bias)
        i_g = jax.nn.sigmoid(gates[:, 0 * H:1 * H])
        f_g = jax.nn.sigmoid(gates[:, 1 * H:2 * H])
        g_g = jnp.tanh(gates[:, 2 * H:3 * H])
        o_g = jax.nn.sigmoid(gates[:, 3 * H:4 * H])
        c_new = f_g * c + i_g * g_g
        h_new = o_g * jnp.tanh(c_new)
        return (h_new, c_new), h_new

    h0 = jnp.zeros((B, H), jnp.float32)
    c0 = jnp.zeros((B, H), jnp.float32)
    _, hs = lax.scan(cell, (h0, c0), jnp.transpose(x, (1, 0, 2)))
    return jnp.transpose(hs, (1, 0, 2)) + residual


if __name__ == "__main__":
    # Shapes consistent with the module's forward:
    # x: (batch=2, seq=8, input_size=16), hidden_size=32 (=> projection used).
    B, S, I, H = 2, 8, 16, 32

    key = jax.random.PRNGKey(0)
    ks = jax.random.split(key, 9)
    scale = 1.0 / jnp.sqrt(jnp.float32(H))

    x = jax.random.normal(ks[0], (B, S, I), dtype=jnp.float32)
    w_ih = jax.random.uniform(ks[1], (4 * H, I), minval=-scale, maxval=scale)
    w_hh = jax.random.uniform(ks[2], (4 * H, H), minval=-scale, maxval=scale)
    b_ih = jax.random.uniform(ks[3], (4 * H,), minval=-scale, maxval=scale)
    b_hh = jax.random.uniform(ks[4], (4 * H,), minval=-scale, maxval=scale)
    w_proj = jax.random.uniform(ks[5], (H, I), minval=-scale, maxval=scale)
    b_proj = jax.random.uniform(ks[6], (H,), minval=-scale, maxval=scale)

    # --- primary check: single chunk (+ drain step), f32 ---
    out = residual_lstm_layer(x, w_ih, w_hh, b_ih, b_hh, w_proj, b_proj)
    out = jax.block_until_ready(out)
    ref = _reference(x, w_ih, w_hh, b_ih, b_hh, w_proj, b_proj)
    assert out.shape == (B, S, H), out.shape
    assert jnp.allclose(out, ref, atol=1e-4, rtol=1e-4), (
        float(jnp.max(jnp.abs(out - ref))))

    # --- multi-chunk pipelined path + sequence/batch padding, f32 ---
    S2 = 40   # 3 chunks of 16 with padded tail
    x2 = jax.random.normal(ks[7], (B, S2, I), dtype=jnp.float32)
    out2 = residual_lstm_layer(x2, w_ih, w_hh, b_ih, b_hh, w_proj, b_proj,
                               seq_chunk=16)
    out2 = jax.block_until_ready(out2)
    ref2 = _reference(x2, w_ih, w_hh, b_ih, b_hh, w_proj, b_proj)
    assert out2.shape == (B, S2, H), out2.shape
    assert jnp.allclose(out2, ref2, atol=1e-4, rtol=1e-4), (
        float(jnp.max(jnp.abs(out2 - ref2))))

    # --- bf16 MXU-operand path (valid on all gens); elementwise stays f32 ---
    out3 = residual_lstm_layer(x, w_ih, w_hh, b_ih, b_hh, w_proj, b_proj,
                               mxu_dtype=jnp.bfloat16)
    out3 = jax.block_until_ready(out3)
    ref3 = _reference(x, w_ih, w_hh, b_ih, b_hh, w_proj, b_proj,
                      mxu_dtype=jnp.bfloat16)
    assert jnp.allclose(out3, ref3, atol=1e-2, rtol=1e-2), (
        float(jnp.max(jnp.abs(out3 - ref3))))

    # --- batch-block ("parallel" grid axis) path, f32 ---
    B3 = 18
    x4 = jax.random.normal(ks[8], (B3, S2, I), dtype=jnp.float32)
    out4 = residual_lstm_layer(x4, w_ih, w_hh, b_ih, b_hh, w_proj, b_proj,
                               seq_chunk=16, batch_block=8)
    out4 = jax.block_until_ready(out4)
    ref4 = _reference(x4, w_ih, w_hh, b_ih, b_hh, w_proj, b_proj)
    assert out4.shape == (B3, S2, H), out4.shape
    assert jnp.allclose(out4, ref4, atol=1e-4, rtol=1e-4), (
        float(jnp.max(jnp.abs(out4 - ref4))))

    print("KERNEL_OK")
</pallas_src>

<mosaic_0001>
module attributes {stable_mosaic.version = 11 : i64} {
  func.func @_residual_lstm_kernel(%arg0: i32, %arg1: i32, %arg2: memref<1x1x64x16xf32, #tpu.memory_space<vmem>>, %arg3: memref<16x640xf32, #tpu.memory_space<vmem>>, %arg4: memref<128x512xf32, #tpu.memory_space<vmem>>, %arg5: memref<1x640xf32, #tpu.memory_space<vmem>>, %arg6: memref<1x1x64x128xf32, #tpu.memory_space<vmem>>, %arg7: memref<8x128xf32, #tpu.memory_space<vmem>>, %arg8: memref<8x128xf32, #tpu.memory_space<vmem>>, %arg9: memref<2x64x640xf32, #tpu.memory_space<vmem>>) attributes {dimension_semantics = [#tpu.dimension_semantics<parallel>, #tpu.dimension_semantics<arbitrary>], iteration_bounds = array<i64: 1, 2>, scalar_prefetch = 0 : i64, scratch_operands = 3 : i64, tpu.core_type = #tpu.core_type<tc>, window_params = [{transform_indices = @transform_0, window_bounds = array<i64: 1, 1, 64, 16>}, {pipeline_mode = #tpu.pipeline_mode<synchronous>, transform_indices = @transform_1, window_bounds = array<i64: 16, 640>}, {pipeline_mode = #tpu.pipeline_mode<synchronous>, transform_indices = @transform_2, window_bounds = array<i64: 128, 512>}, {pipeline_mode = #tpu.pipeline_mode<synchronous>, transform_indices = @transform_3, window_bounds = array<i64: 1, 640>}, {transform_indices = @transform_4, window_bounds = array<i64: 1, 1, 64, 128>}]} {
    %c0_i32 = arith.constant 0 : i32
    %0 = arith.cmpi eq, %arg1, %c0_i32 : i32
    %1 = arith.extui %0 : i1 to i32
    %c0_i32_0 = arith.constant 0 : i32
    %2 = arith.cmpi ne, %1, %c0_i32_0 : i32
    scf.if %2 {
      %cst = arith.constant 0.000000e+00 : f32
      %9 = vector.broadcast %cst : f32 to vector<8x128xf32>
      %c0 = arith.constant 0 : index
      %c0_4 = arith.constant 0 : index
      %10 = vector.load %arg7[%c0, %c0_4] : memref<8x128xf32, #tpu.memory_space<vmem>>, vector<8x128xf32>
      tpu.vector_store %arg7[%c0, %c0_4], %9 {strides = array<i32>} : memref<8x128xf32, #tpu.memory_space<vmem>>, vector<8x128xf32>,
      %cst_5 = arith.constant 0.000000e+00 : f32
      %11 = vector.broadcast %cst_5 : f32 to vector<8x128xf32>
      %c0_6 = arith.constant 0 : index
      %c0_7 = arith.constant 0 : index
      %12 = vector.load %arg8[%c0_6, %c0_7] : memref<8x128xf32, #tpu.memory_space<vmem>>, vector<8x128xf32>
      tpu.vector_store %arg8[%c0_6, %c0_7], %11 {strides = array<i32>} : memref<8x128xf32, #tpu.memory_space<vmem>>, vector<8x128xf32>,
    } else {
    }
    %c1_i32 = arith.constant 1 : i32
    %3 = arith.cmpi slt, %arg1, %c1_i32 : i32
    %4 = arith.extui %3 : i1 to i32
    %c0_i32_1 = arith.constant 0 : i32
    %5 = arith.cmpi ne, %4, %c0_i32_1 : i32
    scf.if %5 {
      %c2_i32 = arith.constant 2 : i32
      %c0_i32_4 = arith.constant 0 : i32
      %9 = arith.cmpi eq, %c2_i32, %c0_i32_4 : i32
      %c1_i32_5 = arith.constant 1 : i32
      %10 = arith.select %9, %c1_i32_5, %c2_i32 : i32
      %11 = arith.remsi %arg1, %10 : i32
      %c0_i32_6 = arith.constant 0 : i32
      %12 = arith.cmpi ne, %11, %c0_i32_6 : i32
      %c0_i32_7 = arith.constant 0 : i32
      %13 = arith.cmpi slt, %11, %c0_i32_7 : i32
      %c0_i32_8 = arith.constant 0 : i32
      %14 = arith.cmpi slt, %10, %c0_i32_8 : i32
      %15 = arith.xori %13, %14 : i1
      %16 = arith.andi %15, %12 : i1
      %17 = arith.addi %11, %10 : i32
      %18 = arith.select %16, %17, %11 : i32
      %c0 = arith.constant 0 : index
      %c0_9 = arith.constant 0 : index
      %c0_10 = arith.constant 0 : index
      %c0_11 = arith.constant 0 : index
      %19 = vector.load %arg2[%c0, %c0_9, %c0_10, %c0_11] : memref<1x1x64x16xf32, #tpu.memory_space<vmem>>, vector<1x1x64x16xf32>
      %20 = vector.shape_cast %19 : vector<1x1x64x16xf32> to vector<64x16xf32>
      %c0_12 = arith.constant 0 : index
      %c0_13 = arith.constant 0 : index
      %21 = vector.load %arg3[%c0_12, %c0_13] : memref<16x640xf32, #tpu.memory_space<vmem>>, vector<16x640xf32>
      %cst = arith.constant dense<0.000000e+00> : vector<64x640xf32>
      %22 = tpu.matmul %20, %21, %cst {dimension_numbers = #tpu.dot_dimension_numbers<[1], [0], [0], [1], [0, 0, 1, 1], [], []>} : vector<64x16xf32>, vector<16x640xf32>, vector<64x640xf32> -> vector<64x640xf32>
      %c0_14 = arith.constant 0 : index
      %c0_15 = arith.constant 0 : index
      %23 = vector.load %arg5[%c0_14, %c0_15] : memref<1x640xf32, #tpu.memory_space<vmem>>, vector<1x640xf32>
      %24 = vector.broadcast %23 : vector<1x640xf32> to vector<64x640xf32>
      %25 = arith.addf %22, %24 : vector<64x640xf32>
      %26 = arith.index_cast %18 : i32 to index
      %c0_16 = arith.constant 0 : index
      %c0_17 = arith.constant 0 : index
      %27 = vector.load %arg9[%26, %c0_16, %c0_17] : memref<2x64x640xf32, #tpu.memory_space<vmem>>, vector<1x64x640xf32>
      %28 = vector.shape_cast %27 : vector<1x64x640xf32> to vector<64x640xf32>
      %29 = vector.shape_cast %25 : vector<64x640xf32> to vector<1x64x640xf32>
      tpu.vector_store %arg9[%26, %c0_16, %c0_17], %29 {strides = array<i32>} : memref<2x64x640xf32, #tpu.memory_space<vmem>>, vector<1x64x640xf32>,
    } else {
    }
    %c0_i32_2 = arith.constant 0 : i32
    %6 = arith.cmpi sgt, %arg1, %c0_i32_2 : i32
    %7 = arith.extui %6 : i1 to i32
    %c0_i32_3 = arith.constant 0 : i32
    %8 = arith.cmpi ne, %7, %c0_i32_3 : i32
    scf.if %8 {
      %c1_i32_4 = arith.constant 1 : i32
      %9 = arith.subi %arg1, %c1_i32_4 : i32
      %c2_i32 = arith.constant 2 : i32
      %c0_i32_5 = arith.constant 0 : i32
      %10 = arith.cmpi eq, %c2_i32, %c0_i32_5 : i32
      %c1_i32_6 = arith.constant 1 : i32
      %11 = arith.select %10, %c1_i32_6, %c2_i32 : i32
      %12 = arith.remsi %9, %11 : i32
      %c0_i32_7 = arith.constant 0 : i32
      %13 = arith.cmpi ne, %12, %c0_i32_7 : i32
      %c0_i32_8 = arith.constant 0 : i32
      %14 = arith.cmpi slt, %12, %c0_i32_8 : i32
      %c0_i32_9 = arith.constant 0 : i32
      %15 = arith.cmpi slt, %11, %c0_i32_9 : i32
      %16 = arith.xori %14, %15 : i1
      %17 = arith.andi %16, %13 : i1
      %18 = arith.addi %12, %11 : i32
      %19 = arith.select %17, %18, %12 : i32
      %c0 = arith.constant 0 : index
      %c0_10 = arith.constant 0 : index
      %20 = vector.load %arg4[%c0, %c0_10] : memref<128x512xf32, #tpu.memory_space<vmem>>, vector<128x512xf32>
      %c0_11 = arith.constant 0 : index
      %c0_12 = arith.constant 0 : index
      %21 = vector.load %arg7[%c0_11, %c0_12] : memref<8x128xf32, #tpu.memory_space<vmem>>, vector<8x128xf32>
      %c0_13 = arith.constant 0 : index
      %c0_14 = arith.constant 0 : index
      %22 = vector.load %arg8[%c0_13, %c0_14] : memref<8x128xf32, #tpu.memory_space<vmem>>, vector<8x128xf32>
      %c0_i32_15 = arith.constant 0 : i32
      %c8_i32 = arith.constant 8 : i32
      %23 = arith.muli %c0_i32_15, %c8_i32 : i32
      %24 = tpu.assume_multiple %23, 8 : i32
      %c0_i32_16 = arith.constant 0 : i32
      %c0_i32_17 = arith.constant 0 : i32
      %25 = tpu.memref_slice %arg9[%19, %c0_i32_16, %c0_i32_17] : memref<2x64x640xf32, #tpu.memory_space<vmem>> -> memref<1x64x640xf32, #tpu.memory_space<vmem>>
      %26 = tpu.memref_squeeze %25 : memref<1x64x640xf32, #tpu.memory_space<vmem>> -> memref<64x640xf32, #tpu.memory_space<vmem>>
      %27 = arith.index_cast %24 : i32 to index
      %c0_18 = arith.constant 0 : index
      %28 = vector.load %26[%27, %c0_18] : memref<64x640xf32, #tpu.memory_space<vmem>>, vector<8x640xf32>
      %29 = vector.extract_strided_slice %28 {offsets = [0, 0], sizes = [8, 512], strides = [1, 1]} : vector<8x640xf32> to vector<8x512xf32>
      %cst = arith.constant dense<0.000000e+00> : vector<8x512xf32>
      %30 = tpu.matmul %21, %20, %cst {dimension_numbers = #tpu.dot_dimension_numbers<[1], [0], [0], [1], [0, 0, 1, 1], [], []>} : vector<8x128xf32>, vector<128x512xf32>, vector<8x512xf32> -> vector<8x512xf32>
      %31 = arith.addf %29, %30 : vector<8x512xf32>
      %32 = vector.extract_strided_slice %31 {offsets = [0, 0], sizes = [8, 384], strides = [1, 1]} : vector<8x512xf32> to vector<8x384xf32>
      %33 = arith.negf %32 : vector<8x384xf32>
      %34 = math.exp %33 : vector<8x384xf32>
      %cst_19 = arith.constant 1.000000e+00 : f32
      %35 = vector.broadcast %cst_19 : f32 to vector<8x384xf32>
      %36 = arith.addf %35, %34 : vector<8x384xf32>
      %37 = arith.divf %35, %36 : vector<8x384xf32>
      %38 = vector.extract_strided_slice %37 {offsets = [0, 0], sizes = [8, 128], strides = [1, 1]} : vector<8x384xf32> to vector<8x128xf32>
      %39 = vector.extract_strided_slice %37 {offsets = [0, 128], sizes = [8, 128], strides = [1, 1]} : vector<8x384xf32> to vector<8x128xf32>
      %40 = vector.extract_strided_slice %37 {offsets = [0, 256], sizes = [8, 128], strides = [1, 1]} : vector<8x384xf32> to vector<8x128xf32>
      %41 = vector.extract_strided_slice %31 {offsets = [0, 384], sizes = [8, 128], strides = [1, 1]} : vector<8x512xf32> to vector<8x128xf32>
      %42 = math.tanh %41 : vector<8x128xf32>
      %43 = arith.mulf %39, %22 : vector<8x128xf32>
      %44 = arith.mulf %38, %42 : vector<8x128xf32>
      %45 = arith.addf %43, %44 : vector<8x128xf32>
      %46 = math.tanh %45 : vector<8x128xf32>
      %47 = arith.mulf %40, %46 : vector<8x128xf32>
      %48 = vector.extract_strided_slice %28 {offsets = [0, 512], sizes = [8, 128], strides = [1, 1]} : vector<8x640xf32> to vector<8x128xf32>
      %49 = arith.addf %47, %48 : vector<8x128xf32>
      %c0_20 = arith.constant 0 : index
      %c0_21 = arith.constant 0 : index
      %50 = arith.index_cast %24 : i32 to index
      %c0_22 = arith.constant 0 : index
      %51 = vector.load %arg6[%c0_20, %c0_21, %50, %c0_22] : memref<1x1x64x128xf32, #tpu.memory_space<vmem>>, vector<1x1x8x128xf32>
      %52 = vector.shape_cast %51 : vector<1x1x8x128xf32> to vector<8x128xf32>
      %53 = vector.shape_cast %49 : vector<8x128xf32> to vector<1x1x8x128xf32>
      tpu.vector_store %arg6[%c0_20, %c0_21, %50, %c0_22], %53 {strides = array<i32>} : memref<1x1x64x128xf32, #tpu.memory_space<vmem>>, vector<1x1x8x128xf32>,
      %c1_i32_23 = arith.constant 1 : i32
      %c8_i32_24 = arith.constant 8 : i32
      %54 = arith.muli %c1_i32_23, %c8_i32_24 : i32
      %55 = tpu.assume_multiple %54, 8 : i32
      %c0_i32_25 = arith.constant 0 : i32
      %c0_i32_26 = arith.constant 0 : i32
      %56 = tpu.memref_slice %arg9[%19, %c0_i32_25, %c0_i32_26] : memref<2x64x640xf32, #tpu.memory_space<vmem>> -> memref<1x64x640xf32, #tpu.memory_space<vmem>>
      %57 = tpu.memref_squeeze %56 : memref<1x64x640xf32, #tpu.memory_space<vmem>> -> memref<64x640xf32, #tpu.memory_space<vmem>>
      %58 = arith.index_cast %55 : i32 to index
      %c0_27 = arith.constant 0 : index
      %59 = vector.load %57[%58, %c0_27] : memref<64x640xf32, #tpu.memory_space<vmem>>, vector<8x640xf32>
      %60 = vector.extract_strided_slice %59 {offsets = [0, 0], sizes = [8, 512], strides = [1, 1]} : vector<8x640xf32> to vector<8x512xf32>
      %cst_28 = arith.constant dense<0.000000e+00> : vector<8x512xf32>
      %61 = tpu.matmul %47, %20, %cst_28 {dimension_numbers = #tpu.dot_dimension_numbers<[1], [0], [0], [1], [0, 0, 1, 1], [], []>} : vector<8x128xf32>, vector<128x512xf32>, vector<8x512xf32> -> vector<8x512xf32>
      %62 = arith.addf %60, %61 : vector<8x512xf32>
      %63 = vector.extract_strided_slice %62 {offsets = [0, 0], sizes = [8, 384], strides = [1, 1]} : vector<8x512xf32> to vector<8x384xf32>
      %64 = arith.negf %63 : vector<8x384xf32>
      %65 = math.exp %64 : vector<8x384xf32>
      %cst_29 = arith.constant 1.000000e+00 : f32
      %66 = vector.broadcast %cst_29 : f32 to vector<8x384xf32>
      %67 = arith.addf %66, %65 : vector<8x384xf32>
      %68 = arith.divf %66, %67 : vector<8x384xf32>
      %69 = vector.extract_strided_slice %68 {offsets = [0, 0], sizes = [8, 128], strides = [1, 1]} : vector<8x384xf32> to vector<8x128xf32>
      %70 = vector.extract_strided_slice %68 {offsets = [0, 128], sizes = [8, 128], strides = [1, 1]} : vector<8x384xf32> to vector<8x128xf32>
      %71 = vector.extract_strided_slice %68 {offsets = [0, 256], sizes = [8, 128], strides = [1, 1]} : vector<8x384xf32> to vector<8x128xf32>
      %72 = vector.extract_strided_slice %62 {offsets = [0, 384], sizes = [8, 128], strides = [1, 1]} : vector<8x512xf32> to vector<8x128xf32>
      %73 = math.tanh %72 : vector<8x128xf32>
      %74 = arith.mulf %70, %45 : vector<8x128xf32>
      %75 = arith.mulf %69, %73 : vector<8x128xf32>
      %76 = arith.addf %74, %75 : vector<8x128xf32>
      %77 = math.tanh %76 : vector<8x128xf32>
      %78 = arith.mulf %71, %77 : vector<8x128xf32>
      %79 = vector.extract_strided_slice %59 {offsets = [0, 512], sizes = [8, 128], strides = [1, 1]} : vector<8x640xf32> to vector<8x128xf32>
      %80 = arith.addf %78, %79 : vector<8x128xf32>
      %c0_30 = arith.constant 0 : index
      %c0_31 = arith.constant 0 : index
      %81 = arith.index_cast %55 : i32 to index
      %c0_32 = arith.constant 0 : index
      %82 = vector.load %arg6[%c0_30, %c0_31, %81, %c0_32] : memref<1x1x64x128xf32, #tpu.memory_space<vmem>>, vector<1x1x8x128xf32>
      %83 = vector.shape_cast %82 : vector<1x1x8x128xf32> to vector<8x128xf32>
      %84 = vector.shape_cast %80 : vector<8x128xf32> to vector<1x1x8x128xf32>
      tpu.vector_store %arg6[%c0_30, %c0_31, %81, %c0_32], %84 {strides = array<i32>} : memref<1x1x64x128xf32, #tpu.memory_space<vmem>>, vector<1x1x8x128xf32>,
      %c2_i32_33 = arith.constant 2 : i32
      %c8_i32_34 = arith.constant 8 : i32
      %85 = arith.muli %c2_i32_33, %c8_i32_34 : i32
      %86 = tpu.assume_multiple %85, 8 : i32
      %c0_i32_35 = arith.constant 0 : i32
      %c0_i32_36 = arith.constant 0 : i32
      %87 = tpu.memref_slice %arg9[%19, %c0_i32_35, %c0_i32_36] : memref<2x64x640xf32, #tpu.memory_space<vmem>> -> memref<1x64x640xf32, #tpu.memory_space<vmem>>
      %88 = tpu.memref_squeeze %87 : memref<1x64x640xf32, #tpu.memory_space<vmem>> -> memref<64x640xf32, #tpu.memory_space<vmem>>
      %89 = arith.index_cast %86 : i32 to index
      %c0_37 = arith.constant 0 : index
      %90 = vector.load %88[%89, %c0_37] : memref<64x640xf32, #tpu.memory_space<vmem>>, vector<8x640xf32>
      %91 = vector.extract_strided_slice %90 {offsets = [0, 0], sizes = [8, 512], strides = [1, 1]} : vector<8x640xf32> to vector<8x512xf32>
      %cst_38 = arith.constant dense<0.000000e+00> : vector<8x512xf32>
      %92 = tpu.matmul %78, %20, %cst_38 {dimension_numbers = #tpu.dot_dimension_numbers<[1], [0], [0], [1], [0, 0, 1, 1], [], []>} : vector<8x128xf32>, vector<128x512xf32>, vector<8x512xf32> -> vector<8x512xf32>
      %93 = arith.addf %91, %92 : vector<8x512xf32>
      %94 = vector.extract_strided_slice %93 {offsets = [0, 0], sizes = [8, 384], strides = [1, 1]} : vector<8x512xf32> to vector<8x384xf32>
      %95 = arith.negf %94 : vector<8x384xf32>
      %96 = math.exp %95 : vector<8x384xf32>
      %cst_39 = arith.constant 1.000000e+00 : f32
      %97 = vector.broadcast %cst_39 : f32 to vector<8x384xf32>
      %98 = arith.addf %97, %96 : vector<8x384xf32>
      %99 = arith.divf %97, %98 : vector<8x384xf32>
      %100 = vector.extract_strided_slice %99 {offsets = [0, 0], sizes = [8, 128], strides = [1, 1]} : vector<8x384xf32> to vector<8x128xf32>
      %101 = vector.extract_strided_slice %99 {offsets = [0, 128], sizes = [8, 128], strides = [1, 1]} : vector<8x384xf32> to vector<8x128xf32>
      %102 = vector.extract_strided_slice %99 {offsets = [0, 256], sizes = [8, 128], strides = [1, 1]} : vector<8x384xf32> to vector<8x128xf32>
      %103 = vector.extract_strided_slice %93 {offsets = [0, 384], sizes = [8, 128], strides = [1, 1]} : vector<8x512xf32> to vector<8x128xf32>
      %104 = math.tanh %103 : vector<8x128xf32>
      %105 = arith.mulf %101, %76 : vector<8x128xf32>
      %106 = arith.mulf %100, %104 : vector<8x128xf32>
      %107 = arith.addf %105, %106 : vector<8x128xf32>
      %108 = math.tanh %107 : vector<8x128xf32>
      %109 = arith.mulf %102, %108 : vector<8x128xf32>
      %110 = vector.extract_strided_slice %90 {offsets = [0, 512], sizes = [8, 128], strides = [1, 1]} : vector<8x640xf32> to vector<8x128xf32>
      %111 = arith.addf %109, %110 : vector<8x128xf32>
      %c0_40 = arith.constant 0 : index
      %c0_41 = arith.constant 0 : index
      %112 = arith.index_cast %86 : i32 to index
      %c0_42 = arith.constant 0 : index
      %113 = vector.load %arg6[%c0_40, %c0_41, %112, %c0_42] : memref<1x1x64x128xf32, #tpu.memory_space<vmem>>, vector<1x1x8x128xf32>
      %114 = vector.shape_cast %113 : vector<1x1x8x128xf32> to vector<8x128xf32>
      %115 = vector.shape_cast %111 : vector<8x128xf32> to vector<1x1x8x128xf32>
      tpu.vector_store %arg6[%c0_40, %c0_41, %112, %c0_42], %115 {strides = array<i32>} : memref<1x1x64x128xf32, #tpu.memory_space<vmem>>, vector<1x1x8x128xf32>,
      %c3_i32 = arith.constant 3 : i32
      %c8_i32_43 = arith.constant 8 : i32
      %116 = arith.muli %c3_i32, %c8_i32_43 : i32
      %117 = tpu.assume_multiple %116, 8 : i32
      %c0_i32_44 = arith.constant 0 : i32
      %c0_i32_45 = arith.constant 0 : i32
      %118 = tpu.memref_slice %arg9[%19, %c0_i32_44, %c0_i32_45] : memref<2x64x640xf32, #tpu.memory_space<vmem>> -> memref<1x64x640xf32, #tpu.memory_space<vmem>>
      %119 = tpu.memref_squeeze %118 : memref<1x64x640xf32, #tpu.memory_space<vmem>> -> memref<64x640xf32, #tpu.memory_space<vmem>>
      %120 = arith.index_cast %117 : i32 to index
      %c0_46 = arith.constant 0 : index
      %121 = vector.load %119[%120, %c0_46] : memref<64x640xf32, #tpu.memory_space<vmem>>, vector<8x640xf32>
      %122 = vector.extract_strided_slice %121 {offsets = [0, 0], sizes = [8, 512], strides = [1, 1]} : vector<8x640xf32> to vector<8x512xf32>
      %cst_47 = arith.constant dense<0.000000e+00> : vector<8x512xf32>
      %123 = tpu.matmul %109, %20, %cst_47 {dimension_numbers = #tpu.dot_dimension_numbers<[1], [0], [0], [1], [0, 0, 1, 1], [], []>} : vector<8x128xf32>, vector<128x512xf32>, vector<8x512xf32> -> vector<8x512xf32>
      %124 = arith.addf %122, %123 : vector<8x512xf32>
      %125 = vector.extract_strided_slice %124 {offsets = [0, 0], sizes = [8, 384], strides = [1, 1]} : vector<8x512xf32> to vector<8x384xf32>
      %126 = arith.negf %125 : vector<8x384xf32>
      %127 = math.exp %126 : vector<8x384xf32>
      %cst_48 = arith.constant 1.000000e+00 : f32
      %128 = vector.broadcast %cst_48 : f32 to vector<8x384xf32>
      %129 = arith.addf %128, %127 : vector<8x384xf32>
      %130 = arith.divf %128, %129 : vector<8x384xf32>
      %131 = vector.extract_strided_slice %130 {offsets = [0, 0], sizes = [8, 128], strides = [1, 1]} : vector<8x384xf32> to vector<8x128xf32>
      %132 = vector.extract_strided_slice %130 {offsets = [0, 128], sizes = [8, 128], strides = [1, 1]} : vector<8x384xf32> to vector<8x128xf32>
      %133 = vector.extract_strided_slice %130 {offsets = [0, 256], sizes = [8, 128], strides = [1, 1]} : vector<8x384xf32> to vector<8x128xf32>
      %134 = vector.extract_strided_slice %124 {offsets = [0, 384], sizes = [8, 128], strides = [1, 1]} : vector<8x512xf32> to vector<8x128xf32>
      %135 = math.tanh %134 : vector<8x128xf32>
      %136 = arith.mulf %132, %107 : vector<8x128xf32>
      %137 = arith.mulf %131, %135 : vector<8x128xf32>
      %138 = arith.addf %136, %137 : vector<8x128xf32>
      %139 = math.tanh %138 : vector<8x128xf32>
      %140 = arith.mulf %133, %139 : vector<8x128xf32>
      %141 = vector.extract_strided_slice %121 {offsets = [0, 512], sizes = [8, 128], strides = [1, 1]} : vector<8x640xf32> to vector<8x128xf32>
      %142 = arith.addf %140, %141 : vector<8x128xf32>
      %c0_49 = arith.constant 0 : index
      %c0_50 = arith.constant 0 : index
      %143 = arith.index_cast %117 : i32 to index
      %c0_51 = arith.constant 0 : index
      %144 = vector.load %arg6[%c0_49, %c0_50, %143, %c0_51] : memref<1x1x64x128xf32, #tpu.memory_space<vmem>>, vector<1x1x8x128xf32>
      %145 = vector.shape_cast %144 : vector<1x1x8x128xf32> to vector<8x128xf32>
      %146 = vector.shape_cast %142 : vector<8x128xf32> to vector<1x1x8x128xf32>
      tpu.vector_store %arg6[%c0_49, %c0_50, %143, %c0_51], %146 {strides = array<i32>} : memref<1x1x64x128xf32, #tpu.memory_space<vmem>>, vector<1x1x8x128xf32>,
      %c4_i32 = arith.constant 4 : i32
      %c8_i32_52 = arith.constant 8 : i32
      %147 = arith.muli %c4_i32, %c8_i32_52 : i32
      %148 = tpu.assume_multiple %147, 8 : i32
      %c0_i32_53 = arith.constant 0 : i32
      %c0_i32_54 = arith.constant 0 : i32
      %149 = tpu.memref_slice %arg9[%19, %c0_i32_53, %c0_i32_54] : memref<2x64x640xf32, #tpu.memory_space<vmem>> -> memref<1x64x640xf32, #tpu.memory_space<vmem>>
      %150 = tpu.memref_squeeze %149 : memref<1x64x640xf32, #tpu.memory_space<vmem>> -> memref<64x640xf32, #tpu.memory_space<vmem>>
      %151 = arith.index_cast %148 : i32 to index
      %c0_55 = arith.constant 0 : index
      %152 = vector.load %150[%151, %c0_55] : memref<64x640xf32, #tpu.memory_space<vmem>>, vector<8x640xf32>
      %153 = vector.extract_strided_slice %152 {offsets = [0, 0], sizes = [8, 512], strides = [1, 1]} : vector<8x640xf32> to vector<8x512xf32>
      %cst_56 = arith.constant dense<0.000000e+00> : vector<8x512xf32>
      %154 = tpu.matmul %140, %20, %cst_56 {dimension_numbers = #tpu.dot_dimension_numbers<[1], [0], [0], [1], [0, 0, 1, 1], [], []>} : vector<8x128xf32>, vector<128x512xf32>, vector<8x512xf32> -> vector<8x512xf32>
      %155 = arith.addf %153, %154 : vector<8x512xf32>
      %156 = vector.extract_strided_slice %155 {offsets = [0, 0], sizes = [8, 384], strides = [1, 1]} : vector<8x512xf32> to vector<8x384xf32>
      %157 = arith.negf %156 : vector<8x384xf32>
      %158 = math.exp %157 : vector<8x384xf32>
      %cst_57 = arith.constant 1.000000e+00 : f32
      %159 = vector.broadcast %cst_57 : f32 to vector<8x384xf32>
      %160 = arith.addf %159, %158 : vector<8x384xf32>
      %161 = arith.divf %159, %160 : vector<8x384xf32>
      %162 = vector.extract_strided_slice %161 {offsets = [0, 0], sizes = [8, 128], strides = [1, 1]} : vector<8x384xf32> to vector<8x128xf32>
      %163 = vector.extract_strided_slice %161 {offsets = [0, 128], sizes = [8, 128], strides = [1, 1]} : vector<8x384xf32> to vector<8x128xf32>
      %164 = vector.extract_strided_slice %161 {offsets = [0, 256], sizes = [8, 128], strides = [1, 1]} : vector<8x384xf32> to vector<8x128xf32>
      %165 = vector.extract_strided_slice %155 {offsets = [0, 384], sizes = [8, 128], strides = [1, 1]} : vector<8x512xf32> to vector<8x128xf32>
      %166 = math.tanh %165 : vector<8x128xf32>
      %167 = arith.mulf %163, %138 : vector<8x128xf32>
      %168 = arith.mulf %162, %166 : vector<8x128xf32>
      %169 = arith.addf %167, %168 : vector<8x128xf32>
      %170 = math.tanh %169 : vector<8x128xf32>
      %171 = arith.mulf %164, %170 : vector<8x128xf32>
      %172 = vector.extract_strided_slice %152 {offsets = [0, 512], sizes = [8, 128], strides = [1, 1]} : vector<8x640xf32> to vector<8x128xf32>
      %173 = arith.addf %171, %172 : vector<8x128xf32>
      %c0_58 = arith.constant 0 : index
      %c0_59 = arith.constant 0 : index
      %174 = arith.index_cast %148 : i32 to index
      %c0_60 = arith.constant 0 : index
      %175 = vector.load %arg6[%c0_58, %c0_59, %174, %c0_60] : memref<1x1x64x128xf32, #tpu.memory_space<vmem>>, vector<1x1x8x128xf32>
      %176 = vector.shape_cast %175 : vector<1x1x8x128xf32> to vector<8x128xf32>
      %177 = vector.shape_cast %173 : vector<8x128xf32> to vector<1x1x8x128xf32>
      tpu.vector_store %arg6[%c0_58, %c0_59, %174, %c0_60], %177 {strides = array<i32>} : memref<1x1x64x128xf32, #tpu.memory_space<vmem>>, vector<1x1x8x128xf32>,
      %c5_i32 = arith.constant 5 : i32
      %c8_i32_61 = arith.constant 8 : i32
      %178 = arith.muli %c5_i32, %c8_i32_61 : i32
      %179 = tpu.assume_multiple %178, 8 : i32
      %c0_i32_62 = arith.constant 0 : i32
      %c0_i32_63 = arith.constant 0 : i32
      %180 = tpu.memref_slice %arg9[%19, %c0_i32_62, %c0_i32_63] : memref<2x64x640xf32, #tpu.memory_space<vmem>> -> memref<1x64x640xf32, #tpu.memory_space<vmem>>
      %181 = tpu.memref_squeeze %180 : memref<1x64x640xf32, #tpu.memory_space<vmem>> -> memref<64x640xf32, #tpu.memory_space<vmem>>
      %182 = arith.index_cast %179 : i32 to index
      %c0_64 = arith.constant 0 : index
      %183 = vector.load %181[%182, %c0_64] : memref<64x640xf32, #tpu.memory_space<vmem>>, vector<8x640xf32>
      %184 = vector.extract_strided_slice %183 {offsets = [0, 0], sizes = [8, 512], strides = [1, 1]} : vector<8x640xf32> to vector<8x512xf32>
      %cst_65 = arith.constant dense<0.000000e+00> : vector<8x512xf32>
      %185 = tpu.matmul %171, %20, %cst_65 {dimension_numbers = #tpu.dot_dimension_numbers<[1], [0], [0], [1], [0, 0, 1, 1], [], []>} : vector<8x128xf32>, vector<128x512xf32>, vector<8x512xf32> -> vector<8x512xf32>
      %186 = arith.addf %184, %185 : vector<8x512xf32>
      %187 = vector.extract_strided_slice %186 {offsets = [0, 0], sizes = [8, 384], strides = [1, 1]} : vector<8x512xf32> to vector<8x384xf32>
      %188 = arith.negf %187 : vector<8x384xf32>
      %189 = math.exp %188 : vector<8x384xf32>
      %cst_66 = arith.constant 1.000000e+00 : f32
      %190 = vector.broadcast %cst_66 : f32 to vector<8x384xf32>
      %191 = arith.addf %190, %189 : vector<8x384xf32>
      %192 = arith.divf %190, %191 : vector<8x384xf32>
      %193 = vector.extract_strided_slice %192 {offsets = [0, 0], sizes = [8, 128], strides = [1, 1]} : vector<8x384xf32> to vector<8x128xf32>
      %194 = vector.extract_strided_slice %192 {offsets = [0, 128], sizes = [8, 128], strides = [1, 1]} : vector<8x384xf32> to vector<8x128xf32>
      %195 = vector.extract_strided_slice %192 {offsets = [0, 256], sizes = [8, 128], strides = [1, 1]} : vector<8x384xf32> to vector<8x128xf32>
      %196 = vector.extract_strided_slice %186 {offsets = [0, 384], sizes = [8, 128], strides = [1, 1]} : vector<8x512xf32> to vector<8x128xf32>
      %197 = math.tanh %196 : vector<8x128xf32>
      %198 = arith.mulf %194, %169 : vector<8x128xf32>
      %199 = arith.mulf %193, %197 : vector<8x128xf32>
      %200 = arith.addf %198, %199 : vector<8x128xf32>
      %201 = math.tanh %200 : vector<8x128xf32>
      %202 = arith.mulf %195, %201 : vector<8x128xf32>
      %203 = vector.extract_strided_slice %183 {offsets = [0, 512], sizes = [8, 128], strides = [1, 1]} : vector<8x640xf32> to vector<8x128xf32>
      %204 = arith.addf %202, %203 : vector<8x128xf32>
      %c0_67 = arith.constant 0 : index
      %c0_68 = arith.constant 0 : index
      %205 = arith.index_cast %179 : i32 to index
      %c0_69 = arith.constant 0 : index
      %206 = vector.load %arg6[%c0_67, %c0_68, %205, %c0_69] : memref<1x1x64x128xf32, #tpu.memory_space<vmem>>, vector<1x1x8x128xf32>
      %207 = vector.shape_cast %206 : vector<1x1x8x128xf32> to vector<8x128xf32>
      %208 = vector.shape_cast %204 : vector<8x128xf32> to vector<1x1x8x128xf32>
      tpu.vector_store %arg6[%c0_67, %c0_68, %205, %c0_69], %208 {strides = array<i32>} : memref<1x1x64x128xf32, #tpu.memory_space<vmem>>, vector<1x1x8x128xf32>,
      %c6_i32 = arith.constant 6 : i32
      %c8_i32_70 = arith.constant 8 : i32
      %209 = arith.muli %c6_i32, %c8_i32_70 : i32
      %210 = tpu.assume_multiple %209, 8 : i32
      %c0_i32_71 = arith.constant 0 : i32
      %c0_i32_72 = arith.constant 0 : i32
      %211 = tpu.memref_slice %arg9[%19, %c0_i32_71, %c0_i32_72] : memref<2x64x640xf32, #tpu.memory_space<vmem>> -> memref<1x64x640xf32, #tpu.memory_space<vmem>>
      %212 = tpu.memref_squeeze %211 : memref<1x64x640xf32, #tpu.memory_space<vmem>> -> memref<64x640xf32, #tpu.memory_space<vmem>>
      %213 = arith.index_cast %210 : i32 to index
      %c0_73 = arith.constant 0 : index
      %214 = vector.load %212[%213, %c0_73] : memref<64x640xf32, #tpu.memory_space<vmem>>, vector<8x640xf32>
      %215 = vector.extract_strided_slice %214 {offsets = [0, 0], sizes = [8, 512], strides = [1, 1]} : vector<8x640xf32> to vector<8x512xf32>
      %cst_74 = arith.constant dense<0.000000e+00> : vector<8x512xf32>
      %216 = tpu.matmul %202, %20, %cst_74 {dimension_numbers = #tpu.dot_dimension_numbers<[1], [0], [0], [1], [0, 0, 1, 1], [], []>} : vector<8x128xf32>, vector<128x512xf32>, vector<8x512xf32> -> vector<8x512xf32>
      %217 = arith.addf %215, %216 : vector<8x512xf32>
      %218 = vector.extract_strided_slice %217 {offsets = [0, 0], sizes = [8, 384], strides = [1, 1]} : vector<8x512xf32> to vector<8x384xf32>
      %219 = arith.negf %218 : vector<8x384xf32>
      %220 = math.exp %219 : vector<8x384xf32>
      %cst_75 = arith.constant 1.000000e+00 : f32
      %221 = vector.broadcast %cst_75 : f32 to vector<8x384xf32>
      %222 = arith.addf %221, %220 : vector<8x384xf32>
      %223 = arith.divf %221, %222 : vector<8x384xf32>
      %224 = vector.extract_strided_slice %223 {offsets = [0, 0], sizes = [8, 128], strides = [1, 1]} : vector<8x384xf32> to vector<8x128xf32>
      %225 = vector.extract_strided_slice %223 {offsets = [0, 128], sizes = [8, 128], strides = [1, 1]} : vector<8x384xf32> to vector<8x128xf32>
      %226 = vector.extract_strided_slice %223 {offsets = [0, 256], sizes = [8, 128], strides = [1, 1]} : vector<8x384xf32> to vector<8x128xf32>
      %227 = vector.extract_strided_slice %217 {offsets = [0, 384], sizes = [8, 128], strides = [1, 1]} : vector<8x512xf32> to vector<8x128xf32>
      %228 = math.tanh %227 : vector<8x128xf32>
      %229 = arith.mulf %225, %200 : vector<8x128xf32>
      %230 = arith.mulf %224, %228 : vector<8x128xf32>
      %231 = arith.addf %229, %230 : vector<8x128xf32>
      %232 = math.tanh %231 : vector<8x128xf32>
      %233 = arith.mulf %226, %232 : vector<8x128xf32>
      %234 = vector.extract_strided_slice %214 {offsets = [0, 512], sizes = [8, 128], strides = [1, 1]} : vector<8x640xf32> to vector<8x128xf32>
      %235 = arith.addf %233, %234 : vector<8x128xf32>
      %c0_76 = arith.constant 0 : index
      %c0_77 = arith.constant 0 : index
      %236 = arith.index_cast %210 : i32 to index
      %c0_78 = arith.constant 0 : index
      %237 = vector.load %arg6[%c0_76, %c0_77, %236, %c0_78] : memref<1x1x64x128xf32, #tpu.memory_space<vmem>>, vector<1x1x8x128xf32>
      %238 = vector.shape_cast %237 : vector<1x1x8x128xf32> to vector<8x128xf32>
      %239 = vector.shape_cast %235 : vector<8x128xf32> to vector<1x1x8x128xf32>
      tpu.vector_store %arg6[%c0_76, %c0_77, %236, %c0_78], %239 {strides = array<i32>} : memref<1x1x64x128xf32, #tpu.memory_space<vmem>>, vector<1x1x8x128xf32>,
      %c7_i32 = arith.constant 7 : i32
      %c8_i32_79 = arith.constant 8 : i32
      %240 = arith.muli %c7_i32, %c8_i32_79 : i32
      %241 = tpu.assume_multiple %240, 8 : i32
      %c0_i32_80 = arith.constant 0 : i32
      %c0_i32_81 = arith.constant 0 : i32
      %242 = tpu.memref_slice %arg9[%19, %c0_i32_80, %c0_i32_81] : memref<2x64x640xf32, #tpu.memory_space<vmem>> -> memref<1x64x640xf32, #tpu.memory_space<vmem>>
      %243 = tpu.memref_squeeze %242 : memref<1x64x640xf32, #tpu.memory_space<vmem>> -> memref<64x640xf32, #tpu.memory_space<vmem>>
      %244 = arith.index_cast %241 : i32 to index
      %c0_82 = arith.constant 0 : index
      %245 = vector.load %243[%244, %c0_82] : memref<64x640xf32, #tpu.memory_space<vmem>>, vector<8x640xf32>
      %246 = vector.extract_strided_slice %245 {offsets = [0, 0], sizes = [8, 512], strides = [1, 1]} : vector<8x640xf32> to vector<8x512xf32>
      %cst_83 = arith.constant dense<0.000000e+00> : vector<8x512xf32>
      %247 = tpu.matmul %233, %20, %cst_83 {dimension_numbers = #tpu.dot_dimension_numbers<[1], [0], [0], [1], [0, 0, 1, 1], [], []>} : vector<8x128xf32>, vector<128x512xf32>, vector<8x512xf32> -> vector<8x512xf32>
      %248 = arith.addf %246, %247 : vector<8x512xf32>
      %249 = vector.extract_strided_slice %248 {offsets = [0, 0], sizes = [8, 384], strides = [1, 1]} : vector<8x512xf32> to vector<8x384xf32>
      %250 = arith.negf %249 : vector<8x384xf32>
      %251 = math.exp %250 : vector<8x384xf32>
      %cst_84 = arith.constant 1.000000e+00 : f32
      %252 = vector.broadcast %cst_84 : f32 to vector<8x384xf32>
      %253 = arith.addf %252, %251 : vector<8x384xf32>
      %254 = arith.divf %252, %253 : vector<8x384xf32>
      %255 = vector.extract_strided_slice %254 {offsets = [0, 0], sizes = [8, 128], strides = [1, 1]} : vector<8x384xf32> to vector<8x128xf32>
      %256 = vector.extract_strided_slice %254 {offsets = [0, 128], sizes = [8, 128], strides = [1, 1]} : vector<8x384xf32> to vector<8x128xf32>
      %257 = vector.extract_strided_slice %254 {offsets = [0, 256], sizes = [8, 128], strides = [1, 1]} : vector<8x384xf32> to vector<8x128xf32>
      %258 = vector.extract_strided_slice %248 {offsets = [0, 384], sizes = [8, 128], strides = [1, 1]} : vector<8x512xf32> to vector<8x128xf32>
      %259 = math.tanh %258 : vector<8x128xf32>
      %260 = arith.mulf %256, %231 : vector<8x128xf32>
      %261 = arith.mulf %255, %259 : vector<8x128xf32>
      %262 = arith.addf %260, %261 : vector<8x128xf32>
      %263 = math.tanh %262 : vector<8x128xf32>
      %264 = arith.mulf %257, %263 : vector<8x128xf32>
      %265 = vector.extract_strided_slice %245 {offsets = [0, 512], sizes = [8, 128], strides = [1, 1]} : vector<8x640xf32> to vector<8x128xf32>
      %266 = arith.addf %264, %265 : vector<8x128xf32>
      %c0_85 = arith.constant 0 : index
      %c0_86 = arith.constant 0 : index
      %267 = arith.index_cast %241 : i32 to index
      %c0_87 = arith.constant 0 : index
      %268 = vector.load %arg6[%c0_85, %c0_86, %267, %c0_87] : memref<1x1x64x128xf32, #tpu.memory_space<vmem>>, vector<1x1x8x128xf32>
      %269 = vector.shape_cast %268 : vector<1x1x8x128xf32> to vector<8x128xf32>
      %270 = vector.shape_cast %266 : vector<8x128xf32> to vector<1x1x8x128xf32>
      tpu.vector_store %arg6[%c0_85, %c0_86, %267, %c0_87], %270 {strides = array<i32>} : memref<1x1x64x128xf32, #tpu.memory_space<vmem>>, vector<1x1x8x128xf32>,
      %c8_i32_88 = arith.constant 8 : i32
      %c0_89 = arith.constant 0 : index
      %c0_90 = arith.constant 0 : index
      %271 = vector.load %arg7[%c0_89, %c0_90] : memref<8x128xf32, #tpu.memory_space<vmem>>, vector<8x128xf32>
      tpu.vector_store %arg7[%c0_89, %c0_90], %264 {strides = array<i32>} : memref<8x128xf32, #tpu.memory_space<vmem>>, vector<8x128xf32>,
      %c0_91 = arith.constant 0 : index
      %c0_92 = arith.constant 0 : index
      %272 = vector.load %arg8[%c0_91, %c0_92] : memref<8x128xf32, #tpu.memory_space<vmem>>, vector<8x128xf32>
      tpu.vector_store %arg8[%c0_91, %c0_92], %262 {strides = array<i32>} : memref<8x128xf32, #tpu.memory_space<vmem>>, vector<8x128xf32>,
    } else {
    }
    return
  }
  func.func @transform_0(%arg0: i32, %arg1: i32) -> (i32, i32, i32, i32) {
    %c0_i32 = arith.constant 0 : i32
    %0 = arith.minsi %arg1, %c0_i32 : i32
    %c0_i32_0 = arith.constant 0 : i32
    %c0_i32_1 = arith.constant 0 : i32
    %c0_i32_2 = arith.constant 0 : i32
    return %arg0, %0, %c0_i32_0, %c0_i32_1 : i32, i32, i32, i32
  }
  func.func @transform_1(%arg0: i32, %arg1: i32) -> (i32, i32) {
    %c0_i32 = arith.constant 0 : i32
    %c0_i32_0 = arith.constant 0 : i32
    %c0_i32_1 = arith.constant 0 : i32
    return %c0_i32, %c0_i32_0 : i32, i32
  }
  func.func @transform_2(%arg0: i32, %arg1: i32) -> (i32, i32) {
    %c0_i32 = arith.constant 0 : i32
    %c0_i32_0 = arith.constant 0 : i32
    %c0_i32_1 = arith.constant 0 : i32
    return %c0_i32, %c0_i32_0 : i32, i32
  }
  func.func @transform_3(%arg0: i32, %arg1: i32) -> (i32, i32) {
    %c0_i32 = arith.constant 0 : i32
    %c0_i32_0 = arith.constant 0 : i32
    %c0_i32_1 = arith.constant 0 : i32
    return %c0_i32, %c0_i32_0 : i32, i32
  }
  func.func @transform_4(%arg0: i32, %arg1: i32) -> (i32, i32, i32, i32) {
    %c1_i32 = arith.constant 1 : i32
    %0 = arith.subi %arg1, %c1_i32 : i32
    %c0_i32 = arith.constant 0 : i32
    %1 = arith.maxsi %0, %c0_i32 : i32
    %c0_i32_0 = arith.constant 0 : i32
    %c0_i32_1 = arith.constant 0 : i32
    %c0_i32_2 = arith.constant 0 : i32
    return %arg0, %1, %c0_i32_0, %c0_i32_1 : i32, i32, i32, i32
  }
}

</mosaic_0001>

<llo_original>
// kernel: custom-call
$region0: #{custom-call}
  %s0 = inlined_call_operand.vmem [shape: f32[640], index: 0, kind: output, shape index: {}]

// kernel: residual_lstm_layer.1
$region0: #{residual_lstm_layer.1}
  #allocation0 [shape = 'u32[]', space=smem, size = 0x4, offset = 0x4, fixed_abs, tag = 'smem constant byte address 0x4 - core index']
  #allocation1 [shape = 'u32[72,128]{1,0:T(1,128)}', space=vmem, size = 0x9000, scoped, tag = 'internal scratch']
  #allocation2 [shape = 'f32[8,128]{1,0:T(8,128)}', space=vmem, size = 0x1000, scoped, tag = 'scratch operand']
  #allocation3 [shape = 'f32[8,128]{1,0:T(8,128)}', space=vmem, size = 0x1000, scoped, tag = 'scratch operand']
  #allocation4 [shape = 'f32[2,64,640]{2,1,0:T(8,128)}', space=vmem, size = 0x50000, scoped, tag = 'scratch operand']
  %s0 = inlined_call_operand.vmem [shape: f32[1,1,64,16], index: 0, kind: input, shape index: {}]
  %s1 = inlined_call_operand.vmem [shape: f32[16,640], index: 1, kind: input, shape index: {}]
  %s2 = inlined_call_operand.vmem [shape: f32[128,512], index: 2, kind: input, shape index: {}]
  %s3 = inlined_call_operand.vmem [shape: f32[1,640], index: 3, kind: input, shape index: {}]
  %s4 = inlined_call_operand.vmem [shape: f32[1,1,64,128], index: 4, kind: output, shape index: {}]
  %s5 = sld [smem:[#allocation0]]
  $region61: #{residual_lstm_layer.1} parent=0
    _
  %s7 = ssub.s32 1, %s5
  %s8 = scalar_select 0, %s7, %s5
  loop: start=0, step=1, limit=4
  $region2: #{residual_lstm_layer.1} parent=0 // loop_pre_header
    _
  $region3: #{residual_lstm_layer.1} parent=0 // loop_header
    %s10 = sphi 0, %s14
    %p11 = scmp.ge.s32.totalorder %s10, 4
    %s17 = sphi 0, %s29
    %s18 = sphi 0, %s25
    %s19 = sphi 0, %s17
    %s20 = sphi 0, %s18
    %s21 = sphi 0, %s19
    %s22 = sphi 0, %s20
    %s38 = sphi 0, %s40
    %s41 = sphi 0, %s38
    %s42 = sphi 0, %s41
    %s58 = sphi 0, %s42
    %s62 = sphi 0, %s62
    %s64 = sphi 0, %s62
    %s65 = sphi 0, %s64
    %s79 = sphi 0, %s65
    %s83 = sphi 0, %s83
    %s85 = sphi 0, %s83
    %s86 = sphi 0, %s85
    %s100 = sphi 0, %s86
    %s104 = sphi 0, %s104
    %s106 = sphi 0, %s104
    %s107 = sphi 0, %s106
    %s121 = sphi 0, %s107
    %s135 = sphi 0, %s137
    %s138 = sphi 0, %s135
    %s139 = sphi 0, %s138
    %s155 = sphi 0, %s139
  $region4: #{residual_lstm_layer.1} parent=0 // loop_header_branch
    %13 = sbr.rel (%p11) target = $region8
  $region5: #{residual_lstm_layer.1} parent=0 // loop_body
    %s15 = ssub.s32 %s10, 1
    %s16 = ssub.s32 %s10, 2
    %s23 = sadd.s32 1, %s18
    %p24 = scmp.ge.s32.totalorder %s23, 2
    %s25 = scalar_select %p24, 0, %s23
    %s26 = sadd.s32 1, %s17
    %s27 = scalar_select %p24, %s26, %s17
    %p28 = scmp.ge.s32.totalorder %s27, 1
    %s29 = scalar_select %p28, 0, %s27
    %p30 = scmp.lt.s32.totalorder %s18, 0
    %s31 = scalar_select %p30, %s18, 0
    %p32 = scmp.lt.s32.totalorder %s25, 0
    %s33 = scalar_select %p32, %s25, 0
    %s34 = ssub.s32 %s17, %s29
    %s35 = ssub.s32 %s31, %s33
    %s36 = sor.u32 %s34, %s35
    %p37 = scmp.eq.s32.totalorder %s36, 0
    %s39 = sadd.s32 %s38, 1
    %s40 = scalar_select %p37, %s38, %s39
    %p43 = pneg %p37
    %p44 = scmp.eq.s32.totalorder %s10, 1
    %p45 = por %p43, %p44
    %p46 = scmp.ne.s32.totalorder %s38, %s41
    %p47 = scmp.eq.s32.totalorder %s10, 0
    %p48 = por %p46, %p47
    %p49 = scmp.ne.s32.totalorder %s38, %s41
    %p50 = scmp.eq.s32.totalorder %s15, 1
    %p51 = por %p49, %p50
    %p52 = scmp.ne.s32.totalorder %s41, %s42
    %p53 = scmp.eq.s32.totalorder %s15, 0
    %p54 = por %p52, %p53
    %p55 = scmp.ne.s32.totalorder %s41, %s42
    %p56 = scmp.eq.s32.totalorder %s16, 1
    %p57 = por %p55, %p56
    %p59 = scmp.ne.s32.totalorder %s42, %s58
    %p60 = scmp.eq.s32.totalorder %s16, 0
    %p61 = por %p59, %p60
    %s63 = sadd.s32 %s62, 1
    %p66 = scmp.eq.s32.totalorder %s10, 1
    %p67 = scmp.ne.s32.totalorder %s62, %s64
    %p68 = scmp.eq.s32.totalorder %s10, 0
    %p69 = por %p67, %p68
    %p70 = scmp.ne.s32.totalorder %s62, %s64
    %p71 = scmp.eq.s32.totalorder %s15, 1
    %p72 = por %p70, %p71
    %p73 = scmp.ne.s32.totalorder %s64, %s65
    %p74 = scmp.eq.s32.totalorder %s15, 0
    %p75 = por %p73, %p74
    %p76 = scmp.ne.s32.totalorder %s64, %s65
    %p77 = scmp.eq.s32.totalorder %s16, 1
    %p78 = por %p76, %p77
    %p80 = scmp.ne.s32.totalorder %s65, %s79
    %p81 = scmp.eq.s32.totalorder %s16, 0
    %p82 = por %p80, %p81
    %s84 = sadd.s32 %s83, 1
    %p87 = scmp.eq.s32.totalorder %s10, 1
    %p88 = scmp.ne.s32.totalorder %s83, %s85
    %p89 = scmp.eq.s32.totalorder %s10, 0
    %p90 = por %p88, %p89
    %p91 = scmp.ne.s32.totalorder %s83, %s85
    %p92 = scmp.eq.s32.totalorder %s15, 1
    %p93 = por %p91, %p92
    %p94 = scmp.ne.s32.totalorder %s85, %s86
    %p95 = scmp.eq.s32.totalorder %s15, 0
    %p96 = por %p94, %p95
    %p97 = scmp.ne.s32.totalorder %s85, %s86
    %p98 = scmp.eq.s32.totalorder %s16, 1
    %p99 = por %p97, %p98
    %p101 = scmp.ne.s32.totalorder %s86, %s100
    %p102 = scmp.eq.s32.totalorder %s16, 0
    %p103 = por %p101, %p102
    %s105 = sadd.s32 %s104, 1
    %p108 = scmp.eq.s32.totalorder %s10, 1
    %p109 = scmp.ne.s32.totalorder %s104, %s106
    %p110 = scmp.eq.s32.totalorder %s10, 0
    %p111 = por %p109, %p110
    %p112 = scmp.ne.s32.totalorder %s104, %s106
    %p113 = scmp.eq.s32.totalorder %s15, 1
    %p114 = por %p112, %p113
    %p115 = scmp.ne.s32.totalorder %s106, %s107
    %p116 = scmp.eq.s32.totalorder %s15, 0
    %p117 = por %p115, %p116
    %p118 = scmp.ne.s32.totalorder %s106, %s107
    %p119 = scmp.eq.s32.totalorder %s16, 1
    %p120 = por %p118, %p119
    %p122 = scmp.ne.s32.totalorder %s107, %s121
    %p123 = scmp.eq.s32.totalorder %s16, 0
    %p124 = por %p122, %p123
    %s125 = ssub.s32 %s18, 1
    %p126 = scmp.gt.s32.totalorder %s125, 0
    %s127 = scalar_select %p126, %s125, 0
    %s128 = ssub.s32 %s25, 1
    %p129 = scmp.gt.s32.totalorder %s128, 0
    %s130 = scalar_select %p129, %s128, 0
    %s131 = ssub.s32 %s17, %s29
    %s132 = ssub.s32 %s127, %s130
    %s133 = sor.u32 %s131, %s132
    %p134 = scmp.eq.s32.totalorder %s133, 0
    %s136 = sadd.s32 %s135, 1
    %s137 = scalar_select %p134, %s135, %s136
    %p140 = pneg %p134
    %p141 = scmp.eq.s32.totalorder %s10, 1
    %p142 = por %p140, %p141
    %p143 = scmp.ne.s32.totalorder %s135, %s138
    %p144 = scmp.eq.s32.totalorder %s10, 0
    %p145 = por %p143, %p144
    %p146 = scmp.ne.s32.totalorder %s135, %s138
    %p147 = scmp.eq.s32.totalorder %s15, 1
    %p148 = por %p146, %p147
    %p149 = scmp.ne.s32.totalorder %s138, %s139
    %p150 = scmp.eq.s32.totalorder %s15, 0
    %p151 = por %p149, %p150
    %p152 = scmp.ne.s32.totalorder %s138, %s139
    %p153 = scmp.eq.s32.totalorder %s16, 1
    %p154 = por %p152, %p153
    %p156 = scmp.ne.s32.totalorder %s139, %s155
    %p157 = scmp.eq.s32.totalorder %s16, 0
    %p158 = por %p156, %p157
    %p159 = scmp.le.s32.totalorder 1, %s10
    %p160 = scmp.lt.s32.totalorder %s10, 3
    %p161 = pnand %p159, %p160
    %p162 = pneg %p161
    // Predicated region
    $region9: #{residual_lstm_layer.1} parent=5 // pred_check
      _
    $region10: #{residual_lstm_layer.1} parent=5 // pred_check_branch
      %164 = sbr.rel (%p161) target = $region12
    $region11: #{residual_lstm_layer.1} parent=5 // pred_region
      %s165 = ssub.s32 %s10, 1
      // Predicated region
      $region13: #{residual_lstm_layer.1} parent=11 // pred_check
        %p166 = pneg %p75
      $region14: #{residual_lstm_layer.1} parent=11 // pred_check_branch
        %168 = sbr.rel (%p166) target = $region16
      $region15: #{residual_lstm_layer.1} parent=11 // pred_region
        _
      $region16: #{residual_lstm_layer.1} parent=11 // pred_fallthru
        _
      // Predicated region
      $region17: #{residual_lstm_layer.1} parent=11 // pred_check
        %p169 = pneg %p96
      $region18: #{residual_lstm_layer.1} parent=11 // pred_check_branch
        %171 = sbr.rel (%p169) target = $region20
      $region19: #{residual_lstm_layer.1} parent=11 // pred_region
        _
      $region20: #{residual_lstm_layer.1} parent=11 // pred_fallthru
        _
      // Predicated region
      $region21: #{residual_lstm_layer.1} parent=11 // pred_check
        %p172 = pneg %p117
      $region22: #{residual_lstm_layer.1} parent=11 // pred_check_branch
        %174 = sbr.rel (%p172) target = $region24
      $region23: #{residual_lstm_layer.1} parent=11 // pred_region
        _
      $region24: #{residual_lstm_layer.1} parent=11 // pred_fallthru
        _
    $region12: #{residual_lstm_layer.1} parent=5 // pred_fallthru
      _
    %p175 = scmp.lt.s32.totalorder %s10, 2
    // Predicated region
    $region25: #{residual_lstm_layer.1} parent=5 // pred_check
      %p176 = pneg %p175
    $region26: #{residual_lstm_layer.1} parent=5 // pred_check_branch
      %178 = sbr.rel (%p176) target = $region28
    $region27: #{residual_lstm_layer.1} parent=5 // pred_region
      // Predicated region
      $region29: #{residual_lstm_layer.1} parent=27 // pred_check
        %p179 = pneg %p48
      $region30: #{residual_lstm_layer.1} parent=27 // pred_check_branch
        %181 = sbr.rel (%p179) target = $region32
      $region31: #{residual_lstm_layer.1} parent=27 // pred_region
        %p182 = scmp.lt.s32.totalorder %s18, 0
        %s183 = scalar_select %p182, %s18, 0
        %p184 = scmp.lt.s32.totalorder %s17, 0
        %s185 = scalar_select %p184, %s17, 0
        %p186 = scmp.lt.s32.totalorder %s183, 0
        %s187 = scalar_select %p186, %s183, 0
        %s188 = smul.addr %s187, 8
        %s189 = smul.addr %s185, 8
        %s190 = sadd.s32 %s188, %s189
        %s191 = smul.addr %s190, 8
        %s192 = scalar_lea.vmem %s0, %s191
        %p193 = scmp.lt.s32.totalorder %s18, 0
        %s194 = scalar_select %p193, %s18, 0
      $region32: #{residual_lstm_layer.1} parent=27 // pred_fallthru
        _
    $region28: #{residual_lstm_layer.1} parent=5 // pred_fallthru
      _
    %p195 = scmp.le.s32.totalorder 1, %s10
    %p196 = scmp.lt.s32.totalorder %s10, 3
    %p197 = pnand %p195, %p196
    %p198 = pneg %p197
    // Predicated region
    $region33: #{residual_lstm_layer.1} parent=5 // pred_check
      _
    $region34: #{residual_lstm_layer.1} parent=5 // pred_check_branch
      %200 = sbr.rel (%p197) target = $region36
    $region35: #{residual_lstm_layer.1} parent=5 // pred_region
      %s201 = ssub.s32 %s10, 1
      %p202 = scmp.lt.s32.totalorder %s20, 0
      %s203 = scalar_select %p202, %s20, 0
      %p204 = scmp.lt.s32.totalorder %s19, 0
      %s205 = scalar_select %p204, %s19, 0
      %p206 = scmp.lt.s32.totalorder %s203, 0
      %s207 = scalar_select %p206, %s203, 0
      %s208 = smul.addr %s207, 8
      %s209 = smul.addr %s205, 8
      %s210 = sadd.s32 %s208, %s209
      %s211 = smul.addr %s210, 8
      %s212 = scalar_lea.vmem %s0, %s211
      %p213 = pneg %p54
      %p214 = pneg %p51
      %p215 = pneg %p75
      %p216 = pneg %p72
      %p217 = pneg %p96
      %p218 = pneg %p93
      %p219 = pneg %p117
      %p220 = pneg %p114
      %p221 = pneg %p151
      %p222 = pneg %p148
      %s223 = ssub.s32 %s20, 1
      %p224 = scmp.gt.s32.totalorder %s223, 0
      %s225 = scalar_select %p224, %s223, 0
      %p226 = scmp.lt.s32.totalorder %s19, 0
      %s227 = scalar_select %p226, %s19, 0
      %p228 = scmp.lt.s32.totalorder %s225, 0
      %s229 = scalar_select %p228, %s225, 0
      %s230 = smul.addr %s229, 8
      %s231 = smul.addr %s227, 8
      %s232 = sadd.s32 %s230, %s231
      %s233 = smul.addr %s232, 8
      %s234 = scalar_lea.vmem %s4, %s233
      %p235 = scmp.lt.s32.totalorder %s20, 0
      %s236 = scalar_select %p235, %s20, 0
      %p237 = scmp.lt.s32.totalorder %s19, 0
      %s238 = scalar_select %p237, %s19, 0
      %p239 = scmp.lt.s32.totalorder %s236, 0
      %s240 = scalar_select %p239, %s236, 0
      %s241 = smul.addr %s240, 8
      %s242 = smul.addr %s238, 8
      %s243 = sadd.s32 %s241, %s242
      %s244 = smul.addr %s243, 8
      %s245 = scalar_lea.vmem %s0, %s244
      %p246 = scmp.lt.s32.totalorder %s20, 0
      %s247 = scalar_select %p246, %s20, 0
      %s248 = ssub.s32 %s20, 1
      %p249 = scmp.gt.s32.totalorder %s248, 0
      %s250 = scalar_select %p249, %s248, 0
      %p251 = scmp.lt.s32.totalorder %s19, 0
      %s252 = scalar_select %p251, %s19, 0
      %p253 = scmp.lt.s32.totalorder %s250, 0
      %s254 = scalar_select %p253, %s250, 0
      %s255 = smul.addr %s254, 8
      %s256 = smul.addr %s252, 8
      %s257 = sadd.s32 %s255, %s256
      %s258 = smul.addr %s257, 8
      %s259 = scalar_lea.vmem %s4, %s258
      %s260 = ssub.s32 %s20, 1
      %p261 = scmp.gt.s32.totalorder %s260, 0
      %s262 = scalar_select %p261, %s260, 0
      %p263 = scmp.eq.s32.totalorder %s20, 0
      // Predicated region
      $region37: #{residual_lstm_layer.1} parent=35 // pred_check
        %p264 = pneg %p263
      $region38: #{residual_lstm_layer.1} parent=35 // pred_check_branch
        %266 = sbr.rel (%p264) target = $region40
      $region39: #{residual_lstm_layer.1} parent=35 // pred_region
        %267 = vst [vmem:[#allocation2] sm:$0xff] 0.0
        %268 = vst [vmem:[#allocation3] sm:$0xff] 0.0
      $region40: #{residual_lstm_layer.1} parent=35 // pred_fallthru
        _
      %p269 = scmp.lt.s32.totalorder %s20, 1
      // Predicated region
      $region41: #{residual_lstm_layer.1} parent=35 // pred_check
        %p270 = pneg %p269
      $region42: #{residual_lstm_layer.1} parent=35 // pred_check_branch
        %272 = sbr.rel (%p270) target = $region44
      $region43: #{residual_lstm_layer.1} parent=35 // pred_region
        %p273 = scmp.lt.s32.totalorder %s20, 0
        %s274 = ssub.s32 0, %s20
        %s275 = scalar_select %p273, %s274, %s20
        %s276 = sand.u32 %s275, 1
        %s277 = ssub.s32 0, %s276
        %s278 = scalar_select %p273, %s277, %s276
        %p279 = scmp.ne.s32.totalorder %s278, 0
        %p280 = scmp.lt.s32.totalorder %s278, 0
        %p281 = pnand %p280, %p279
        %p282 = pneg %p281
        %s283 = sadd.s32 %s278, 2
        %s284 = scalar_select %p282, %s283, %s278
        %v285 = vld [vmem:[%s245] sm:$0xff]
        %v286 = vld [vmem:[%s245 + $0x8] sm:$0xff]
        %v287 = vld [vmem:[%s245 + $0x10] sm:$0xff]
        %v288 = vld [vmem:[%s245 + $0x18] sm:$0xff]
        %v289 = vld [vmem:[%s245 + $0x20] sm:$0xff]
        %v290 = vld [vmem:[%s245 + $0x28] sm:$0xff]
        %v291 = vld [vmem:[%s245 + $0x30] sm:$0xff]
        %v292 = vld [vmem:[%s245 + $0x38] sm:$0xff]
        %v293 = vld [vmem:[%s1] sm:$0xff]
        %v294 = vld [vmem:[%s1 + $0x8] sm:$0xff]
        %v295 = vld [vmem:[%s1 + $0x10] sm:$0xff]
        %v296 = vld [vmem:[%s1 + $0x18] sm:$0xff]
        %v297 = vld [vmem:[%s1 + $0x20] sm:$0xff]
        %v298 = vld [vmem:[%s1 + $0x28] sm:$0xff]
        %v299 = vld [vmem:[%s1 + $0x30] sm:$0xff]
        %v300 = vld [vmem:[%s1 + $0x38] sm:$0xff]
        %v301 = vld [vmem:[%s1 + $0x40] sm:$0xff]
        %v302 = vld [vmem:[%s1 + $0x48] sm:$0xff]
        %v303 = vld [vmem:[%s3] sm:$0x1f]
        %v305 = vperm.slane %v303, 0
        %v306 = vperm.slane %v303, 1
        %v307 = vperm.slane %v303, 2
        %v308 = vperm.slane %v303, 3
        %v309 = vperm.slane %v303, 4
        %vm315 = vcmask 130048
        %v317 = vsel %vm315, %v285, 0
        %v320 = vsel %vm315, %v286, 0
        %v323 = vsel %vm315, %v287, 0
        %v326 = vsel %vm315, %v288, 0
        %v329 = vsel %vm315, %v289, 0
        %v332 = vsel %vm315, %v290, 0
        %v335 = vsel %vm315, %v291, 0
        %v338 = vsel %vm315, %v292, 0
        %340 = vmatpush.msra.mxu0 0.0
        %341 = vmatpush.msra.mxu0 0.0
        %342 = vmatpush.msra.mxu0 0.0
        %343 = vmatpush.msra.mxu0 0.0
        %344 = vmatpush.msra.mxu0 0.0
        %345 = vmatpush.msra.mxu0 0.0
        %346 = vmatpush.msra.mxu0 0.0
        %347 = vmatpush.msra.mxu0 0.0
        %348 = vmatpush.msra.mxu0 0.0
        %349 = vmatpush.msra.mxu0 0.0
        %350 = vmatpush.msra.mxu0 0.0
        %351 = vmatpush.msra.mxu0 0.0
        %352 = vmatpush.msra.mxu0 0.0
        %353 = vmatpush.msra.mxu0 0.0
        %354 = vmatpush.msra.mxu0 %v298
        %355 = vmatpush.msra.mxu0 %v293
        %356 = vmatmul.f32.gmra.mxu0 %v317
        %v357 = vpop.f32.mrf.mxu0
        %v358 = vadd.f32 %v305, %v357
        %359 = vmatmul.f32.gmra.mxu0 %v320
        %v360 = vpop.f32.mrf.mxu0
        %v361 = vadd.f32 %v305, %v360
        %362 = vmatmul.f32.gmra.mxu0 %v323
        %v363 = vpop.f32.mrf.mxu0
        %v364 = vadd.f32 %v305, %v363
        %365 = vmatmul.f32.gmra.mxu0 %v326
        %v366 = vpop.f32.mrf.mxu0
        %v367 = vadd.f32 %v305, %v366
        %368 = vmatmul.f32.gmra.mxu0 %v329
        %v369 = vpop.f32.mrf.mxu0
        %v370 = vadd.f32 %v305, %v369
        %371 = vmatmul.f32.gmra.mxu0 %v332
        %v372 = vpop.f32.mrf.mxu0
        %v373 = vadd.f32 %v305, %v372
        %374 = vmatmul.f32.gmra.mxu0 %v335
        %v375 = vpop.f32.mrf.mxu0
        %v376 = vadd.f32 %v305, %v375
        %377 = vmatmul.f32.gmra.mxu0 %v338
        %v378 = vpop.f32.mrf.mxu0
        %v379 = vadd.f32 %v305, %v378
        %380 = vdwg.mxu0
        %381 = vmatpush.msra.mxu0 0.0
        %382 = vmatpush.msra.mxu0 0.0
        %383 = vmatpush.msra.mxu0 0.0
        %384 = vmatpush.msra.mxu0 0.0
        %385 = vmatpush.msra.mxu0 0.0
        %386 = vmatpush.msra.mxu0 0.0
        %387 = vmatpush.msra.mxu0 0.0
        %388 = vmatpush.msra.mxu0 0.0
        %389 = vmatpush.msra.mxu0 0.0
        %390 = vmatpush.msra.mxu0 0.0
        %391 = vmatpush.msra.mxu0 0.0
        %392 = vmatpush.msra.mxu0 0.0
        %393 = vmatpush.msra.mxu0 0.0
        %394 = vmatpush.msra.mxu0 0.0
        %395 = vmatpush.msra.mxu0 %v299
        %396 = vmatpush.msra.mxu0 %v294
        %397 = vmatmul.f32.gmra.mxu0 %v317
        %v398 = vpop.f32.mrf.mxu0
        %v399 = vadd.f32 %v306, %v398
        %400 = vmatmul.f32.gmra.mxu0 %v320
        %v401 = vpop.f32.mrf.mxu0
        %v402 = vadd.f32 %v306, %v401
        %403 = vmatmul.f32.gmra.mxu0 %v323
        %v404 = vpop.f32.mrf.mxu0
        %v405 = vadd.f32 %v306, %v404
        %406 = vmatmul.f32.gmra.mxu0 %v326
        %v407 = vpop.f32.mrf.mxu0
        %v408 = vadd.f32 %v306, %v407
        %409 = vmatmul.f32.gmra.mxu0 %v329
        %v410 = vpop.f32.mrf.mxu0
        %v411 = vadd.f32 %v306, %v410
        %412 = vmatmul.f32.gmra.mxu0 %v332
        %v413 = vpop.f32.mrf.mxu0
        %v414 = vadd.f32 %v306, %v413
        %415 = vmatmul.f32.gmra.mxu0 %v335
        %v416 = vpop.f32.mrf.mxu0
        %v417 = vadd.f32 %v306, %v416
        %418 = vmatmul.f32.gmra.mxu0 %v338
        %v419 = vpop.f32.mrf.mxu0
        %v420 = vadd.f32 %v306, %v419
        %421 = vdwg.mxu0
        %422 = vmatpush.msra.mxu0 0.0
        %423 = vmatpush.msra.mxu0 0.0
        %424 = vmatpush.msra.mxu0 0.0
        %425 = vmatpush.msra.mxu0 0.0
        %426 = vmatpush.msra.mxu0 0.0
        %427 = vmatpush.msra.mxu0 0.0
        %428 = vmatpush.msra.mxu0 0.0
        %429 = vmatpush.msra.mxu0 0.0
        %430 = vmatpush.msra.mxu0 0.0
        %431 = vmatpush.msra.mxu0 0.0
        %432 = vmatpush.msra.mxu0 0.0
        %433 = vmatpush.msra.mxu0 0.0
        %434 = vmatpush.msra.mxu0 0.0
        %435 = vmatpush.msra.mxu0 0.0
        %436 = vmatpush.msra.mxu0 %v300
        %437 = vmatpush.msra.mxu0 %v295
        %438 = vmatmul.f32.gmra.mxu0 %v317
        %v439 = vpop.f32.mrf.mxu0
        %v440 = vadd.f32 %v307, %v439
        %441 = vmatmul.f32.gmra.mxu0 %v320
        %v442 = vpop.f32.mrf.mxu0
        %v443 = vadd.f32 %v307, %v442
        %444 = vmatmul.f32.gmra.mxu0 %v323
        %v445 = vpop.f32.mrf.mxu0
        %v446 = vadd.f32 %v307, %v445
        %447 = vmatmul.f32.gmra.mxu0 %v326
        %v448 = vpop.f32.mrf.mxu0
        %v449 = vadd.f32 %v307, %v448
        %450 = vmatmul.f32.gmra.mxu0 %v329
        %v451 = vpop.f32.mrf.mxu0
        %v452 = vadd.f32 %v307, %v451
        %453 = vmatmul.f32.gmra.mxu0 %v332
        %v454 = vpop.f32.mrf.mxu0
        %v455 = vadd.f32 %v307, %v454
        %456 = vmatmul.f32.gmra.mxu0 %v335
        %v457 = vpop.f32.mrf.mxu0
        %v458 = vadd.f32 %v307, %v457
        %459 = vmatmul.f32.gmra.mxu0 %v338
        %v460 = vpop.f32.mrf.mxu0
        %v461 = vadd.f32 %v307, %v460
        %462 = vdwg.mxu0
        %463 = vmatpush.msra.mxu0 0.0
        %464 = vmatpush.msra.mxu0 0.0
        %465 = vmatpush.msra.mxu0 0.0
        %466 = vmatpush.msra.mxu0 0.0
        %467 = vmatpush.msra.mxu0 0.0
        %468 = vmatpush.msra.mxu0 0.0
        %469 = vmatpush.msra.mxu0 0.0
        %470 = vmatpush.msra.mxu0 0.0
        %471 = vmatpush.msra.mxu0 0.0
        %472 = vmatpush.msra.mxu0 0.0
        %473 = vmatpush.msra.mxu0 0.0
        %474 = vmatpush.msra.mxu0 0.0
        %475 = vmatpush.msra.mxu0 0.0
        %476 = vmatpush.msra.mxu0 0.0
        %477 = vmatpush.msra.mxu0 %v301
        %478 = vmatpush.msra.mxu0 %v296
        %479 = vmatmul.f32.gmra.mxu0 %v317
        %v480 = vpop.f32.mrf.mxu0
        %v481 = vadd.f32 %v308, %v480
        %482 = vmatmul.f32.gmra.mxu0 %v320
        %v483 = vpop.f32.mrf.mxu0
        %v484 = vadd.f32 %v308, %v483
        %485 = vmatmul.f32.gmra.mxu0 %v323
        %v486 = vpop.f32.mrf.mxu0
        %v487 = vadd.f32 %v308, %v486
        %488 = vmatmul.f32.gmra.mxu0 %v326
        %v489 = vpop.f32.mrf.mxu0
        %v490 = vadd.f32 %v308, %v489
        %491 = vmatmul.f32.gmra.mxu0 %v329
        %v492 = vpop.f32.mrf.mxu0
        %v493 = vadd.f32 %v308, %v492
        %494 = vmatmul.f32.gmra.mxu0 %v332
        %v495 = vpop.f32.mrf.mxu0
        %v496 = vadd.f32 %v308, %v495
        %497 = vmatmul.f32.gmra.mxu0 %v335
        %v498 = vpop.f32.mrf.mxu0
        %v499 = vadd.f32 %v308, %v498
        %500 = vmatmul.f32.gmra.mxu0 %v338
        %v501 = vpop.f32.mrf.mxu0
        %v502 = vadd.f32 %v308, %v501
        %503 = vdwg.mxu0
        %504 = vmatpush.msra.mxu0 0.0
        %505 = vmatpush.msra.mxu0 0.0
        %506 = vmatpush.msra.mxu0 0.0
        %507 = vmatpush.msra.mxu0 0.0
        %508 = vmatpush.msra.mxu0 0.0
        %509 = vmatpush.msra.mxu0 0.0
        %510 = vmatpush.msra.mxu0 0.0
        %511 = vmatpush.msra.mxu0 0.0
        %512 = vmatpush.msra.mxu0 0.0
        %513 = vmatpush.msra.mxu0 0.0
        %514 = vmatpush.msra.mxu0 0.0
        %515 = vmatpush.msra.mxu0 0.0
        %516 = vmatpush.msra.mxu0 0.0
        %517 = vmatpush.msra.mxu0 0.0
        %518 = vmatpush.msra.mxu0 %v302
        %519 = vmatpush.msra.mxu0 %v297
        %520 = vmatmul.f32.gmra.mxu0 %v317
        %v521 = vpop.f32.mrf.mxu0
        %v522 = vadd.f32 %v309, %v521
        %523 = vmatmul.f32.gmra.mxu0 %v320
        %v524 = vpop.f32.mrf.mxu0
        %v525 = vadd.f32 %v309, %v524
        %526 = vmatmul.f32.gmra.mxu0 %v323
        %v527 = vpop.f32.mrf.mxu0
        %v528 = vadd.f32 %v309, %v527
        %529 = vmatmul.f32.gmra.mxu0 %v326
        %v530 = vpop.f32.mrf.mxu0
        %v531 = vadd.f32 %v309, %v530
        %532 = vmatmul.f32.gmra.mxu0 %v329
        %v533 = vpop.f32.mrf.mxu0
        %v534 = vadd.f32 %v309, %v533
        %535 = vmatmul.f32.gmra.mxu0 %v332
        %v536 = vpop.f32.mrf.mxu0
        %v537 = vadd.f32 %v309, %v536
        %538 = vmatmul.f32.gmra.mxu0 %v335
        %v539 = vpop.f32.mrf.mxu0
        %v540 = vadd.f32 %v309, %v539
        %541 = vmatmul.f32.gmra.mxu0 %v338
        %v542 = vpop.f32.mrf.mxu0
        %v543 = vadd.f32 %v309, %v542
        %544 = vdwg.mxu0
        %s545 = smul.u32 %s284, 40
        %s546 = smul.addr %s545, 8
        %s547 = scalar_lea.vmem [#allocation4], %s546
        %548 = vst [vmem:[%s547] sm:$0xff] %v358
        %549 = vst [vmem:[%s547 + $0x8] sm:$0xff] %v399
        %550 = vst [vmem:[%s547 + $0x10] sm:$0xff] %v440
        %551 = vst [vmem:[%s547 + $0x18] sm:$0xff] %v481
        %552 = vst [vmem:[%s547 + $0x20] sm:$0xff] %v522
        %553 = vst [vmem:[%s547 + $0x28] sm:$0xff] %v361
        %554 = vst [vmem:[%s547 + $0x30] sm:$0xff] %v402
        %555 = vst [vmem:[%s547 + $0x38] sm:$0xff] %v443
        %556 = vst [vmem:[%s547 + $0x40] sm:$0xff] %v484
        %557 = vst [vmem:[%s547 + $0x48] sm:$0xff] %v525
        %558 = vst [vmem:[%s547 + $0x50] sm:$0xff] %v364
        %559 = vst [vmem:[%s547 + $0x58] sm:$0xff] %v405
        %560 = vst [vmem:[%s547 + $0x60] sm:$0xff] %v446
        %561 = vst [vmem:[%s547 + $0x68] sm:$0xff] %v487
        %562 = vst [vmem:[%s547 + $0x70] sm:$0xff] %v528
        %563 = vst [vmem:[%s547 + $0x78] sm:$0xff] %v367
        %564 = vst [vmem:[%s547 + $0x80] sm:$0xff] %v408
        %565 = vst [vmem:[%s547 + $0x88] sm:$0xff] %v449
        %566 = vst [vmem:[%s547 + $0x90] sm:$0xff] %v490
        %567 = vst [vmem:[%s547 + $0x98] sm:$0xff] %v531
        %568 = vst [vmem:[%s547 + $0xa0] sm:$0xff] %v370
        %569 = vst [vmem:[%s547 + $0xa8] sm:$0xff] %v411
        %570 = vst [vmem:[%s547 + $0xb0] sm:$0xff] %v452
        %571 = vst [vmem:[%s547 + $0xb8] sm:$0xff] %v493
        %572 = vst [vmem:[%s547 + $0xc0] sm:$0xff] %v534
        %573 = vst [vmem:[%s547 + $0xc8] sm:$0xff] %v373
        %574 = vst [vmem:[%s547 + $0xd0] sm:$0xff] %v414
        %575 = vst [vmem:[%s547 + $0xd8] sm:$0xff] %v455
        %576 = vst [vmem:[%s547 + $0xe0] sm:$0xff] %v496
        %577 = vst [vmem:[%s547 + $0xe8] sm:$0xff] %v537
        %578 = vst [vmem:[%s547 + $0xf0] sm:$0xff] %v376
        %579 = vst [vmem:[%s547 + $0xf8] sm:$0xff] %v417
        %580 = vst [vmem:[%s547 + $0x100] sm:$0xff] %v458
        %581 = vst [vmem:[%s547 + $0x108] sm:$0xff] %v499
        %582 = vst [vmem:[%s547 + $0x110] sm:$0xff] %v540
        %583 = vst [vmem:[%s547 + $0x118] sm:$0xff] %v379
        %584 = vst [vmem:[%s547 + $0x120] sm:$0xff] %v420
        %585 = vst [vmem:[%s547 + $0x128] sm:$0xff] %v461
        %586 = vst [vmem:[%s547 + $0x130] sm:$0xff] %v502
        %587 = vst [vmem:[%s547 + $0x138] sm:$0xff] %v543
      $region44: #{residual_lstm_layer.1} parent=35 // pred_fallthru
        _
      %p588 = scmp.gt.s32.totalorder %s20, 0
      // Predicated region
      $region45: #{residual_lstm_layer.1} parent=35 // pred_check
        %p589 = pneg %p588
      $region46: #{residual_lstm_layer.1} parent=35 // pred_check_branch
        %591 = sbr.rel (%p589) target = $region48
      $region47: #{residual_lstm_layer.1} parent=35 // pred_region
        %s592 = ssub.s32 %s20, 1
        %p593 = scmp.lt.s32.totalorder %s592, 0
        %s594 = ssub.s32 0, %s592
        %s595 = scalar_select %p593, %s594, %s592
        %s596 = sand.u32 %s595, 1
        %s597 = ssub.s32 0, %s596
        %s598 = scalar_select %p593, %s597, %s596
        %p599 = scmp.ne.s32.totalorder %s598, 0
        %p600 = scmp.lt.s32.totalorder %s598, 0
        %p601 = pnand %p600, %p599
        %p602 = pneg %p601
        %s603 = sadd.s32 %s598, 2
        %s604 = scalar_select %p602, %s603, %s598
        %v605 = vld [vmem:[%s2] sm:$0xff]
        %v606 = vld [vmem:[%s2 + $0x8] sm:$0xff]
        %v607 = vld [vmem:[%s2 + $0x10] sm:$0xff]
        %v608 = vld [vmem:[%s2 + $0x18] sm:$0xff]
        %v609 = vld [vmem:[%s2 + $0x20] sm:$0xff]
        %v610 = vld [vmem:[%s2 + $0x28] sm:$0xff]
        %v611 = vld [vmem:[%s2 + $0x30] sm:$0xff]
        %v612 = vld [vmem:[%s2 + $0x38] sm:$0xff]
        %v613 = vld [vmem:[%s2 + $0x40] sm:$0xff]
        %v614 = vld [vmem:[%s2 + $0x48] sm:$0xff]
        %v615 = vld [vmem:[%s2 + $0x50] sm:$0xff]
        %v616 = vld [vmem:[%s2 + $0x58] sm:$0xff]
        %v617 = vld [vmem:[%s2 + $0x60] sm:$0xff]
        %v618 = vld [vmem:[%s2 + $0x68] sm:$0xff]
        %v619 = vld [vmem:[%s2 + $0x70] sm:$0xff]
        %v620 = vld [vmem:[%s2 + $0x78] sm:$0xff]
        %v621 = vld [vmem:[%s2 + $0x80] sm:$0xff]
        %v622 = vld [vmem:[%s2 + $0x88] sm:$0xff]
        %v623 = vld [vmem:[%s2 + $0x90] sm:$0xff]
        %v624 = vld [vmem:[%s2 + $0x98] sm:$0xff]
        %v625 = vld [vmem:[%s2 + $0xa0] sm:$0xff]
        %v626 = vld [vmem:[%s2 + $0xa8] sm:$0xff]
        %v627 = vld [vmem:[%s2 + $0xb0] sm:$0xff]
        %v628 = vld [vmem:[%s2 + $0xb8] sm:$0xff]
        %v629 = vld [vmem:[%s2 + $0xc0] sm:$0xff]
        %v630 = vld [vmem:[%s2 + $0xc8] sm:$0xff]
        %v631 = vld [vmem:[%s2 + $0xd0] sm:$0xff]
        %v632 = vld [vmem:[%s2 + $0xd8] sm:$0xff]
        %v633 = vld [vmem:[%s2 + $0xe0] sm:$0xff]
        %v634 = vld [vmem:[%s2 + $0xe8] sm:$0xff]
        %v635 = vld [vmem:[%s2 + $0xf0] sm:$0xff]
        %v636 = vld [vmem:[%s2 + $0xf8] sm:$0xff]
        %v637 = vld [vmem:[%s2 + $0x100] sm:$0xff]
        %v638 = vld [vmem:[%s2 + $0x108] sm:$0xff]
        %v639 = vld [vmem:[%s2 + $0x110] sm:$0xff]
        %v640 = vld [vmem:[%s2 + $0x118] sm:$0xff]
        %v641 = vld [vmem:[%s2 + $0x120] sm:$0xff]
        %v642 = vld [vmem:[%s2 + $0x128] sm:$0xff]
        %v643 = vld [vmem:[%s2 + $0x130] sm:$0xff]
        %v644 = vld [vmem:[%s2 + $0x138] sm:$0xff]
        %v645 = vld [vmem:[%s2 + $0x140] sm:$0xff]
        %v646 = vld [vmem:[%s2 + $0x148] sm:$0xff]
        %v647 = vld [vmem:[%s2 + $0x150] sm:$0xff]
        %v648 = vld [vmem:[%s2 + $0x158] sm:$0xff]
        %v649 = vld [vmem:[%s2 + $0x160] sm:$0xff]
        %v650 = vld [vmem:[%s2 + $0x168] sm:$0xff]
        %v651 = vld [vmem:[%s2 + $0x170] sm:$0xff]
        %v652 = vld [vmem:[%s2 + $0x178] sm:$0xff]
        %v653 = vld [vmem:[%s2 + $0x180] sm:$0xff]
        %v654 = vld [vmem:[%s2 + $0x188] sm:$0xff]
        %v655 = vld [vmem:[%s2 + $0x190] sm:$0xff]
        %v656 = vld [vmem:[%s2 + $0x198] sm:$0xff]
        %v657 = vld [vmem:[%s2 + $0x1a0] sm:$0xff]
        %v658 = vld [vmem:[%s2 + $0x1a8] sm:$0xff]
        %v659 = vld [vmem:[%s2 + $0x1b0] sm:$0xff]
        %v660 = vld [vmem:[%s2 + $0x1b8] sm:$0xff]
        %v661 = vld [vmem:[%s2 + $0x1c0] sm:$0xff]
        %v662 = vld [vmem:[%s2 + $0x1c8] sm:$0xff]
        %v663 = vld [vmem:[%s2 + $0x1d0] sm:$0xff]
        %v664 = vld [vmem:[%s2 + $0x1d8] sm:$0xff]
        %v665 = vld [vmem:[%s2 + $0x1e0] sm:$0xff]
        %v666 = vld [vmem:[%s2 + $0x1e8] sm:$0xff]
        %v667 = vld [vmem:[%s2 + $0x1f0] sm:$0xff]
        %v668 = vld [vmem:[%s2 + $0x1f8] sm:$0xff]
        %v669 = vld [vmem:[#allocation2] sm:$0xff]
        %v670 = vld [vmem:[#allocation3] sm:$0xff]
        %s671 = smul.u32 %s604, 40
        %s672 = smul.addr %s671, 8
        %s673 = scalar_lea.vmem [#allocation4], %s672
        %s674 = smul.u32 0, 5
        %s675 = smul.addr %s674, 8
        %s676 = scalar_lea.vmem %s673, %s675 [#allocation4]
        %v677 = vld [vmem:[%s676] sm:$0xff]
        %v678 = vld [vmem:[%s676 + $0x8] sm:$0xff]
        %v679 = vld [vmem:[%s676 + $0x10] sm:$0xff]
        %v680 = vld [vmem:[%s676 + $0x18] sm:$0xff]
        %v681 = vld [vmem:[%s676 + $0x20] sm:$0xff]
        %682 = vmatpush.msra.mxu0 %v665
        %683 = vmatpush.msra.mxu0 %v661
        %684 = vmatpush.msra.mxu0 %v657
        %685 = vmatpush.msra.mxu0 %v653
        %686 = vmatpush.msra.mxu0 %v649
        %687 = vmatpush.msra.mxu0 %v645
        %688 = vmatpush.msra.mxu0 %v641
        %689 = vmatpush.msra.mxu0 %v637
        %690 = vmatpush.msra.mxu0 %v633
        %691 = vmatpush.msra.mxu0 %v629
        %692 = vmatpush.msra.mxu0 %v625
        %693 = vmatpush.msra.mxu0 %v621
        %694 = vmatpush.msra.mxu0 %v617
        %695 = vmatpush.msra.mxu0 %v613
        %696 = vmatpush.msra.mxu0 %v609
        %697 = vmatpush.msra.mxu0 %v605
        %698 = vmatmul.f32.gmra.mxu0 %v669
        %v699 = vpop.f32.mrf.mxu0
        %v700 = vadd.f32 0.0, %v699
        %701 = vdwg.mxu0
        %702 = vmatpush.msra.mxu0 %v666
        %703 = vmatpush.msra.mxu0 %v662
        %704 = vmatpush.msra.mxu0 %v658
        %705 = vmatpush.msra.mxu0 %v654
        %706 = vmatpush.msra.mxu0 %v650
        %707 = vmatpush.msra.mxu0 %v646
        %708 = vmatpush.msra.mxu0 %v642
        %709 = vmatpush.msra.mxu0 %v638
        %710 = vmatpush.msra.mxu0 %v634
        %711 = vmatpush.msra.mxu0 %v630
        %712 = vmatpush.msra.mxu0 %v626
        %713 = vmatpush.msra.mxu0 %v622
        %714 = vmatpush.msra.mxu0 %v618
        %715 = vmatpush.msra.mxu0 %v614
        %716 = vmatpush.msra.mxu0 %v610
        %717 = vmatpush.msra.mxu0 %v606
        %718 = vmatmul.f32.gmra.mxu0 %v669
        %v719 = vpop.f32.mrf.mxu0
        %v720 = vadd.f32 0.0, %v719
        %721 = vdwg.mxu0
        %722 = vmatpush.msra.mxu0 %v667
        %723 = vmatpush.msra.mxu0 %v663
        %724 = vmatpush.msra.mxu0 %v659
        %725 = vmatpush.msra.mxu0 %v655
        %726 = vmatpush.msra.mxu0 %v651
        %727 = vmatpush.msra.mxu0 %v647
        %728 = vmatpush.msra.mxu0 %v643
        %729 = vmatpush.msra.mxu0 %v639
        %730 = vmatpush.msra.mxu0 %v635
        %731 = vmatpush.msra.mxu0 %v631
        %732 = vmatpush.msra.mxu0 %v627
        %733 = vmatpush.msra.mxu0 %v623
        %734 = vmatpush.msra.mxu0 %v619
        %735 = vmatpush.msra.mxu0 %v615
        %736 = vmatpush.msra.mxu0 %v611
        %737 = vmatpush.msra.mxu0 %v607
        %738 = vmatmul.f32.gmra.mxu0 %v669
        %v739 = vpop.f32.mrf.mxu0
        %v740 = vadd.f32 0.0, %v739
        %741 = vdwg.mxu0
        %742 = vmatpush.msra.mxu0 %v668
        %743 = vmatpush.msra.mxu0 %v664
        %744 = vmatpush.msra.mxu0 %v660
        %745 = vmatpush.msra.mxu0 %v656
        %746 = vmatpush.msra.mxu0 %v652
        %747 = vmatpush.msra.mxu0 %v648
        %748 = vmatpush.msra.mxu0 %v644
        %749 = vmatpush.msra.mxu0 %v640
        %750 = vmatpush.msra.mxu0 %v636
        %751 = vmatpush.msra.mxu0 %v632
        %752 = vmatpush.msra.mxu0 %v628
        %753 = vmatpush.msra.mxu0 %v624
        %754 = vmatpush.msra.mxu0 %v620
        %755 = vmatpush.msra.mxu0 %v616
        %756 = vmatpush.msra.mxu0 %v612
        %757 = vmatpush.msra.mxu0 %v608
        %758 = vmatmul.f32.gmra.mxu0 %v669
        %v759 = vpop.f32.mrf.mxu0
        %v760 = vadd.f32 0.0, %v759
        %761 = vdwg.mxu0
        %v762 = vadd.f32 %v677, %v700
        %v763 = vadd.f32 %v678, %v720
        %v764 = vadd.f32 %v679, %v740
        %v765 = vadd.f32 %v680, %v760
        %v766 = vxor.u32 %v762, 2147483648
        %v767 = vxor.u32 %v763, 2147483648
        %v768 = vxor.u32 %v764, 2147483648
        %v769 = vmul.f32 %v766, 1.442695
        %v770 = vpow.pop %v769
        %v771 = vmul.f32 %v767, 1.442695
        %v772 = vpow.pop %v771
        %v773 = vmul.f32 %v768, 1.442695
        %v774 = vpow.pop %v773
        %v775 = vadd.f32 %v770, 1.0
        %v776 = vadd.f32 %v772, 1.0
        %v777 = vadd.f32 %v774, 1.0
        %v778 = vrcp.pop %v775
        %v779 = vmul.f32 %v775, %v778
        %v780 = vsub.f32 1.0, %v779
        %v781 = vmul.f32 %v778, %v780
        %v782 = vadd.f32 %v778, %v781
        %vm783 = vweird.f32 %v775
        %vm784 = vweird.f32 %v778
        %vm785 = vmor %vm783, %vm784
        %v786 = vsel %vm785, %v778, %v782
        %v787 = vand.u32 2147483647, %v775
        %vm788 = vcmp.eq.f32.partialorder %v787, 8.507059e+37
        %v789 = vand.u32 %v775, 2147483648
        %v790 = vor.u32 1.1754944e-38, %v789
        %v791 = vsel %vm788, %v790, %v786
        %v792 = vmul.f32 1.0, %v791
        %v793 = vrcp.pop %v776
        %v794 = vmul.f32 %v776, %v793
        %v795 = vsub.f32 1.0, %v794
        %v796 = vmul.f32 %v793, %v795
        %v797 = vadd.f32 %v793, %v796
        %vm798 = vweird.f32 %v776
        %vm799 = vweird.f32 %v793
        %vm800 = vmor %vm798, %vm799
        %v801 = vsel %vm800, %v793, %v797
        %v802 = vand.u32 2147483647, %v776
        %vm803 = vcmp.eq.f32.partialorder %v802, 8.507059e+37
        %v804 = vand.u32 %v776, 2147483648
        %v805 = vor.u32 1.1754944e-38, %v804
        %v806 = vsel %vm803, %v805, %v801
        %v807 = vmul.f32 1.0, %v806
        %v808 = vrcp.pop %v777
        %v809 = vmul.f32 %v777, %v808
        %v810 = vsub.f32 1.0, %v809
        %v811 = vmul.f32 %v808, %v810
        %v812 = vadd.f32 %v808, %v811
        %vm813 = vweird.f32 %v777
        %vm814 = vweird.f32 %v808
        %vm815 = vmor %vm813, %vm814
        %v816 = vsel %vm815, %v808, %v812
        %v817 = vand.u32 2147483647, %v777
        %vm818 = vcmp.eq.f32.partialorder %v817, 8.507059e+37
        %v819 = vand.u32 %v777, 2147483648
        %v820 = vor.u32 1.1754944e-38, %v819
        %v821 = vsel %vm818, %v820, %v816
        %v822 = vmul.f32 1.0, %v821
        %v823 = vtanh.pop %v765
        %v824 = vmul.f32 %v807, %v670
        %v825 = vmul.f32 %v792, %v823
        %v826 = vadd.f32 %v824, %v825
        %v827 = vtanh.pop %v826
        %v828 = vmul.f32 %v822, %v827
        %v829 = vadd.f32 %v828, %v681
        %830 = vst [vmem:[%s259] sm:$0xff] %v829
        %s831 = smul.u32 1, 5
        %s832 = smul.addr %s831, 8
        %s833 = scalar_lea.vmem %s673, %s832 [#allocation4]
        %v834 = vld [vmem:[%s833] sm:$0xff]
        %v835 = vld [vmem:[%s833 + $0x8] sm:$0xff]
        %v836 = vld [vmem:[%s833 + $0x10] sm:$0xff]
        %v837 = vld [vmem:[%s833 + $0x18] sm:$0xff]
        %v838 = vld [vmem:[%s833 + $0x20] sm:$0xff]
        %839 = vmatpush.msra.mxu0 %v665
        %840 = vmatpush.msra.mxu0 %v661
        %841 = vmatpush.msra.mxu0 %v657
        %842 = vmatpush.msra.mxu0 %v653
        %843 = vmatpush.msra.mxu0 %v649
        %844 = vmatpush.msra.mxu0 %v645
        %845 = vmatpush.msra.mxu0 %v641
        %846 = vmatpush.msra.mxu0 %v637
        %847 = vmatpush.msra.mxu0 %v633
        %848 = vmatpush.msra.mxu0 %v629
        %849 = vmatpush.msra.mxu0 %v625
        %850 = vmatpush.msra.mxu0 %v621
        %851 = vmatpush.msra.mxu0 %v617
        %852 = vmatpush.msra.mxu0 %v613
        %853 = vmatpush.msra.mxu0 %v609
        %854 = vmatpush.msra.mxu0 %v605
        %855 = vmatmul.f32.gmra.mxu0 %v828
        %v856 = vpop.f32.mrf.mxu0
        %v857 = vadd.f32 0.0, %v856
        %858 = vdwg.mxu0
        %859 = vmatpush.msra.mxu0 %v666
        %860 = vmatpush.msra.mxu0 %v662
        %861 = vmatpush.msra.mxu0 %v658
        %862 = vmatpush.msra.mxu0 %v654
        %863 = vmatpush.msra.mxu0 %v650
        %864 = vmatpush.msra.mxu0 %v646
        %865 = vmatpush.msra.mxu0 %v642
        %866 = vmatpush.msra.mxu0 %v638
        %867 = vmatpush.msra.mxu0 %v634
        %868 = vmatpush.msra.mxu0 %v630
        %869 = vmatpush.msra.mxu0 %v626
        %870 = vmatpush.msra.mxu0 %v622
        %871 = vmatpush.msra.mxu0 %v618
        %872 = vmatpush.msra.mxu0 %v614
        %873 = vmatpush.msra.mxu0 %v610
        %874 = vmatpush.msra.mxu0 %v606
        %875 = vmatmul.f32.gmra.mxu0 %v828
        %v876 = vpop.f32.mrf.mxu0
        %v877 = vadd.f32 0.0, %v876
        %878 = vdwg.mxu0
        %879 = vmatpush.msra.mxu0 %v667
        %880 = vmatpush.msra.mxu0 %v663
        %881 = vmatpush.msra.mxu0 %v659
        %882 = vmatpush.msra.mxu0 %v655
        %883 = vmatpush.msra.mxu0 %v651
        %884 = vmatpush.msra.mxu0 %v647
        %885 = vmatpush.msra.mxu0 %v643
        %886 = vmatpush.msra.mxu0 %v639
        %887 = vmatpush.msra.mxu0 %v635
        %888 = vmatpush.msra.mxu0 %v631
        %889 = vmatpush.msra.mxu0 %v627
        %890 = vmatpush.msra.mxu0 %v623
        %891 = vmatpush.msra.mxu0 %v619
        %892 = vmatpush.msra.mxu0 %v615
        %893 = vmatpush.msra.mxu0 %v611
        %894 = vmatpush.msra.mxu0 %v607
        %895 = vmatmul.f32.gmra.mxu0 %v828
        %v896 = vpop.f32.mrf.mxu0
        %v897 = vadd.f32 0.0, %v896
        %898 = vdwg.mxu0
        %899 = vmatpush.msra.mxu0 %v668
        %900 = vmatpush.msra.mxu0 %v664
        %901 = vmatpush.msra.mxu0 %v660
        %902 = vmatpush.msra.mxu0 %v656
        %903 = vmatpush.msra.mxu0 %v652
        %904 = vmatpush.msra.mxu0 %v648
        %905 = vmatpush.msra.mxu0 %v644
        %906 = vmatpush.msra.mxu0 %v640
        %907 = vmatpush.msra.mxu0 %v636
        %908 = vmatpush.msra.mxu0 %v632
        %909 = vmatpush.msra.mxu0 %v628
        %910 = vmatpush.msra.mxu0 %v624
        %911 = vmatpush.msra.mxu0 %v620
        %912 = vmatpush.msra.mxu0 %v616
        %913 = vmatpush.msra.mxu0 %v612
        %914 = vmatpush.msra.mxu0 %v608
        %915 = vmatmul.f32.gmra.mxu0 %v828
        %v916 = vpop.f32.mrf.mxu0
        %v917 = vadd.f32 0.0, %v916
        %918 = vdwg.mxu0
        %v919 = vadd.f32 %v834, %v857
        %v920 = vadd.f32 %v835, %v877
        %v921 = vadd.f32 %v836, %v897
        %v922 = vadd.f32 %v837, %v917
        %v923 = vxor.u32 %v919, 2147483648
        %v924 = vxor.u32 %v920, 2147483648
        %v925 = vxor.u32 %v921, 2147483648
        %v926 = vmul.f32 %v923, 1.442695
        %v927 = vpow.pop %v926
        %v928 = vmul.f32 %v924, 1.442695
        %v929 = vpow.pop %v928
        %v930 = vmul.f32 %v925, 1.442695
        %v931 = vpow.pop %v930
        %v932 = vadd.f32 %v927, 1.0
        %v933 = vadd.f32 %v929, 1.0
        %v934 = vadd.f32 %v931, 1.0
        %v935 = vrcp.pop %v932
        %v936 = vmul.f32 %v932, %v935
        %v937 = vsub.f32 1.0, %v936
        %v938 = vmul.f32 %v935, %v937
        %v939 = vadd.f32 %v935, %v938
        %vm940 = vweird.f32 %v932
        %vm941 = vweird.f32 %v935
        %vm942 = vmor %vm940, %vm941
        %v943 = vsel %vm942, %v935, %v939
        %v944 = vand.u32 2147483647, %v932
        %vm945 = vcmp.eq.f32.partialorder %v944, 8.507059e+37
        %v946 = vand.u32 %v932, 2147483648
        %v947 = vor.u32 1.1754944e-38, %v946
        %v948 = vsel %vm945, %v947, %v943
        %v949 = vmul.f32 1.0, %v948
        %v950 = vrcp.pop %v933
        %v951 = vmul.f32 %v933, %v950
        %v952 = vsub.f32 1.0, %v951
        %v953 = vmul.f32 %v950, %v952
        %v954 = vadd.f32 %v950, %v953
        %vm955 = vweird.f32 %v933
        %vm956 = vweird.f32 %v950
        %vm957 = vmor %vm955, %vm956
        %v958 = vsel %vm957, %v950, %v954
        %v959 = vand.u32 2147483647, %v933
        %vm960 = vcmp.eq.f32.partialorder %v959, 8.507059e+37
        %v961 = vand.u32 %v933, 2147483648
        %v962 = vor.u32 1.1754944e-38, %v961
        %v963 = vsel %vm960, %v962, %v958
        %v964 = vmul.f32 1.0, %v963
        %v965 = vrcp.pop %v934
        %v966 = vmul.f32 %v934, %v965
        %v967 = vsub.f32 1.0, %v966
        %v968 = vmul.f32 %v965, %v967
        %v969 = vadd.f32 %v965, %v968
        %vm970 = vweird.f32 %v934
        %vm971 = vweird.f32 %v965
        %vm972 = vmor %vm970, %vm971
        %v973 = vsel %vm972, %v965, %v969
        %v974 = vand.u32 2147483647, %v934
        %vm975 = vcmp.eq.f32.partialorder %v974, 8.507059e+37
        %v976 = vand.u32 %v934, 2147483648
        %v977 = vor.u32 1.1754944e-38, %v976
        %v978 = vsel %vm975, %v977, %v973
        %v979 = vmul.f32 1.0, %v978
        %v980 = vtanh.pop %v922
        %v981 = vmul.f32 %v964, %v826
        %v982 = vmul.f32 %v949, %v980
        %v983 = vadd.f32 %v981, %v982
        %v984 = vtanh.pop %v983
        %v985 = vmul.f32 %v979, %v984
        %v986 = vadd.f32 %v985, %v838
        %s987 = scalar_lea.vmem %s259, 8
        %988 = vst [vmem:[%s987] sm:$0xff] %v986
        %s989 = smul.u32 2, 5
        %s990 = smul.addr %s989, 8
        %s991 = scalar_lea.vmem %s673, %s990 [#allocation4]
        %v992 = vld [vmem:[%s991] sm:$0xff]
        %v993 = vld [vmem:[%s991 + $0x8] sm:$0xff]
        %v994 = vld [vmem:[%s991 + $0x10] sm:$0xff]
        %v995 = vld [vmem:[%s991 + $0x18] sm:$0xff]
        %v996 = vld [vmem:[%s991 + $0x20] sm:$0xff]
        %997 = vmatpush.msra.mxu0 %v665
        %998 = vmatpush.msra.mxu0 %v661
        %999 = vmatpush.msra.mxu0 %v657
        %1000 = vmatpush.msra.mxu0 %v653
        %1001 = vmatpush.msra.mxu0 %v649
        %1002 = vmatpush.msra.mxu0 %v645
        %1003 = vmatpush.msra.mxu0 %v641
        %1004 = vmatpush.msra.mxu0 %v637
        %1005 = vmatpush.msra.mxu0 %v633
        %1006 = vmatpush.msra.mxu0 %v629
        %1007 = vmatpush.msra.mxu0 %v625
        %1008 = vmatpush.msra.mxu0 %v621
        %1009 = vmatpush.msra.mxu0 %v617
        %1010 = vmatpush.msra.mxu0 %v613
        %1011 = vmatpush.msra.mxu0 %v609
        %1012 = vmatpush.msra.mxu0 %v605
        %1013 = vmatmul.f32.gmra.mxu0 %v985
        %v1014 = vpop.f32.mrf.mxu0
        %v1015 = vadd.f32 0.0, %v1014
        %1016 = vdwg.mxu0
        %1017 = vmatpush.msra.mxu0 %v666
        %1018 = vmatpush.msra.mxu0 %v662
        %1019 = vmatpush.msra.mxu0 %v658
        %1020 = vmatpush.msra.mxu0 %v654
        %1021 = vmatpush.msra.mxu0 %v650
        %1022 = vmatpush.msra.mxu0 %v646
        %1023 = vmatpush.msra.mxu0 %v642
        %1024 = vmatpush.msra.mxu0 %v638
        %1025 = vmatpush.msra.mxu0 %v634
        %1026 = vmatpush.msra.mxu0 %v630
        %1027 = vmatpush.msra.mxu0 %v626
        %1028 = vmatpush.msra.mxu0 %v622
        %1029 = vmatpush.msra.mxu0 %v618
        %1030 = vmatpush.msra.mxu0 %v614
        %1031 = vmatpush.msra.mxu0 %v610
        %1032 = vmatpush.msra.mxu0 %v606
        %1033 = vmatmul.f32.gmra.mxu0 %v985
        %v1034 = vpop.f32.mrf.mxu0
        %v1035 = vadd.f32 0.0, %v1034
        %1036 = vdwg.mxu0
        %1037 = vmatpush.msra.mxu0 %v667
        %1038 = vmatpush.msra.mxu0 %v663
        %1039 = vmatpush.msra.mxu0 %v659
        %1040 = vmatpush.msra.mxu0 %v655
        %1041 = vmatpush.msra.mxu0 %v651
        %1042 = vmatpush.msra.mxu0 %v647
        %1043 = vmatpush.msra.mxu0 %v643
        %1044 = vmatpush.msra.mxu0 %v639
        %1045 = vmatpush.msra.mxu0 %v635
        %1046 = vmatpush.msra.mxu0 %v631
        %1047 = vmatpush.msra.mxu0 %v627
        %1048 = vmatpush.msra.mxu0 %v623
        %1049 = vmatpush.msra.mxu0 %v619
        %1050 = vmatpush.msra.mxu0 %v615
        %1051 = vmatpush.msra.mxu0 %v611
        %1052 = vmatpush.msra.mxu0 %v607
        %1053 = vmatmul.f32.gmra.mxu0 %v985
        %v1054 = vpop.f32.mrf.mxu0
        %v1055 = vadd.f32 0.0, %v1054
        %1056 = vdwg.mxu0
        %1057 = vmatpush.msra.mxu0 %v668
        %1058 = vmatpush.msra.mxu0 %v664
        %1059 = vmatpush.msra.mxu0 %v660
        %1060 = vmatpush.msra.mxu0 %v656
        %1061 = vmatpush.msra.mxu0 %v652
        %1062 = vmatpush.msra.mxu0 %v648
        %1063 = vmatpush.msra.mxu0 %v644
        %1064 = vmatpush.msra.mxu0 %v640
        %1065 = vmatpush.msra.mxu0 %v636
        %1066 = vmatpush.msra.mxu0 %v632
        %1067 = vmatpush.msra.mxu0 %v628
        %1068 = vmatpush.msra.mxu0 %v624
        %1069 = vmatpush.msra.mxu0 %v620
        %1070 = vmatpush.msra.mxu0 %v616
        %1071 = vmatpush.msra.mxu0 %v612
        %1072 = vmatpush.msra.mxu0 %v608
        %1073 = vmatmul.f32.gmra.mxu0 %v985
        %v1074 = vpop.f32.mrf.mxu0
        %v1075 = vadd.f32 0.0, %v1074
        %1076 = vdwg.mxu0
        %v1077 = vadd.f32 %v992, %v1015
        %v1078 = vadd.f32 %v993, %v1035
        %v1079 = vadd.f32 %v994, %v1055
        %v1080 = vadd.f32 %v995, %v1075
        %v1081 = vxor.u32 %v1077, 2147483648
        %v1082 = vxor.u32 %v1078, 2147483648
        %v1083 = vxor.u32 %v1079, 2147483648
        %v1084 = vmul.f32 %v1081, 1.442695
        %v1085 = vpow.pop %v1084
        %v1086 = vmul.f32 %v1082, 1.442695
        %v1087 = vpow.pop %v1086
        %v1088 = vmul.f32 %v1083, 1.442695
        %v1089 = vpow.pop %v1088
        %v1090 = vadd.f32 %v1085, 1.0
        %v1091 = vadd.f32 %v1087, 1.0
        %v1092 = vadd.f32 %v1089, 1.0
        %v1093 = vrcp.pop %v1090
        %v1094 = vmul.f32 %v1090, %v1093
        %v1095 = vsub.f32 1.0, %v1094
        %v1096 = vmul.f32 %v1093, %v1095
        %v1097 = vadd.f32 %v1093, %v1096
        %vm1098 = vweird.f32 %v1090
        %vm1099 = vweird.f32 %v1093
        %vm1100 = vmor %vm1098, %vm1099
        %v1101 = vsel %vm1100, %v1093, %v1097
        %v1102 = vand.u32 2147483647, %v1090
        %vm1103 = vcmp.eq.f32.partialorder %v1102, 8.507059e+37
        %v1104 = vand.u32 %v1090, 2147483648
        %v1105 = vor.u32 1.1754944e-38, %v1104
        %v1106 = vsel %vm1103, %v1105, %v1101
        %v1107 = vmul.f32 1.0, %v1106
        %v1108 = vrcp.pop %v1091
        %v1109 = vmul.f32 %v1091, %v1108
        %v1110 = vsub.f32 1.0, %v1109
        %v1111 = vmul.f32 %v1108, %v1110
        %v1112 = vadd.f32 %v1108, %v1111
        %vm1113 = vweird.f32 %v1091
        %vm1114 = vweird.f32 %v1108
        %vm1115 = vmor %vm1113, %vm1114
        %v1116 = vsel %vm1115, %v1108, %v1112
        %v1117 = vand.u32 2147483647, %v1091
        %vm1118 = vcmp.eq.f32.partialorder %v1117, 8.507059e+37
        %v1119 = vand.u32 %v1091, 2147483648
        %v1120 = vor.u32 1.1754944e-38, %v1119
        %v1121 = vsel %vm1118, %v1120, %v1116
        %v1122 = vmul.f32 1.0, %v1121
        %v1123 = vrcp.pop %v1092
        %v1124 = vmul.f32 %v1092, %v1123
        %v1125 = vsub.f32 1.0, %v1124
        %v1126 = vmul.f32 %v1123, %v1125
        %v1127 = vadd.f32 %v1123, %v1126
        %vm1128 = vweird.f32 %v1092
        %vm1129 = vweird.f32 %v1123
        %vm1130 = vmor %vm1128, %vm1129
        %v1131 = vsel %vm1130, %v1123, %v1127
        %v1132 = vand.u32 2147483647, %v1092
        %vm1133 = vcmp.eq.f32.partialorder %v1132, 8.507059e+37
        %v1134 = vand.u32 %v1092, 2147483648
        %v1135 = vor.u32 1.1754944e-38, %v1134
        %v1136 = vsel %vm1133, %v1135, %v1131
        %v1137 = vmul.f32 1.0, %v1136
        %v1138 = vtanh.pop %v1080
        %v1139 = vmul.f32 %v1122, %v983
        %v1140 = vmul.f32 %v1107, %v1138
        %v1141 = vadd.f32 %v1139, %v1140
        %v1142 = vtanh.pop %v1141
        %v1143 = vmul.f32 %v1137, %v1142
        %v1144 = vadd.f32 %v1143, %v996
        %s1145 = scalar_lea.vmem %s259, 16
        %1146 = vst [vmem:[%s1145] sm:$0xff] %v1144
        %s1147 = smul.u32 3, 5
        %s1148 = smul.addr %s1147, 8
        %s1149 = scalar_lea.vmem %s673, %s1148 [#allocation4]
        %v1150 = vld [vmem:[%s1149] sm:$0xff]
        %v1151 = vld [vmem:[%s1149 + $0x8] sm:$0xff]
        %v1152 = vld [vmem:[%s1149 + $0x10] sm:$0xff]
        %v1153 = vld [vmem:[%s1149 + $0x18] sm:$0xff]
        %v1154 = vld [vmem:[%s1149 + $0x20] sm:$0xff]
        %1155 = vmatpush.msra.mxu0 %v665
        %1156 = vmatpush.msra.mxu0 %v661
        %1157 = vmatpush.msra.mxu0 %v657
        %1158 = vmatpush.msra.mxu0 %v653
        %1159 = vmatpush.msra.mxu0 %v649
        %1160 = vmatpush.msra.mxu0 %v645
        %1161 = vmatpush.msra.mxu0 %v641
        %1162 = vmatpush.msra.mxu0 %v637
        %1163 = vmatpush.msra.mxu0 %v633
        %1164 = vmatpush.msra.mxu0 %v629
        %1165 = vmatpush.msra.mxu0 %v625
        %1166 = vmatpush.msra.mxu0 %v621
        %1167 = vmatpush.msra.mxu0 %v617
        %1168 = vmatpush.msra.mxu0 %v613
        %1169 = vmatpush.msra.mxu0 %v609
        %1170 = vmatpush.msra.mxu0 %v605
        %1171 = vmatmul.f32.gmra.mxu0 %v1143
        %v1172 = vpop.f32.mrf.mxu0
        %v1173 = vadd.f32 0.0, %v1172
        %1174 = vdwg.mxu0
        %1175 = vmatpush.msra.mxu0 %v666
        %1176 = vmatpush.msra.mxu0 %v662
        %1177 = vmatpush.msra.mxu0 %v658
        %1178 = vmatpush.msra.mxu0 %v654
        %1179 = vmatpush.msra.mxu0 %v650
        %1180 = vmatpush.msra.mxu0 %v646
        %1181 = vmatpush.msra.mxu0 %v642
        %1182 = vmatpush.msra.mxu0 %v638
        %1183 = vmatpush.msra.mxu0 %v634
        %1184 = vmatpush.msra.mxu0 %v630
        %1185 = vmatpush.msra.mxu0 %v626
        %1186 = vmatpush.msra.mxu0 %v622
        %1187 = vmatpush.msra.mxu0 %v618
        %1188 = vmatpush.msra.mxu0 %v614
        %1189 = vmatpush.msra.mxu0 %v610
        %1190 = vmatpush.msra.mxu0 %v606
        %1191 = vmatmul.f32.gmra.mxu0 %v1143
        %v1192 = vpop.f32.mrf.mxu0
        %v1193 = vadd.f32 0.0, %v1192
        %1194 = vdwg.mxu0
        %1195 = vmatpush.msra.mxu0 %v667
        %1196 = vmatpush.msra.mxu0 %v663
        %1197 = vmatpush.msra.mxu0 %v659
        %1198 = vmatpush.msra.mxu0 %v655
        %1199 = vmatpush.msra.mxu0 %v651
        %1200 = vmatpush.msra.mxu0 %v647
        %1201 = vmatpush.msra.mxu0 %v643
        %1202 = vmatpush.msra.mxu0 %v639
        %1203 = vmatpush.msra.mxu0 %v635
        %1204 = vmatpush.msra.mxu0 %v631
        %1205 = vmatpush.msra.mxu0 %v627
        %1206 = vmatpush.msra.mxu0 %v623
        %1207 = vmatpush.msra.mxu0 %v619
        %1208 = vmatpush.msra.mxu0 %v615
        %1209 = vmatpush.msra.mxu0 %v611
        %1210 = vmatpush.msra.mxu0 %v607
        %1211 = vmatmul.f32.gmra.mxu0 %v1143
        %v1212 = vpop.f32.mrf.mxu0
        %v1213 = vadd.f32 0.0, %v1212
        %1214 = vdwg.mxu0
        %1215 = vmatpush.msra.mxu0 %v668
        %1216 = vmatpush.msra.mxu0 %v664
        %1217 = vmatpush.msra.mxu0 %v660
        %1218 = vmatpush.msra.mxu0 %v656
        %1219 = vmatpush.msra.mxu0 %v652
        %1220 = vmatpush.msra.mxu0 %v648
        %1221 = vmatpush.msra.mxu0 %v644
        %1222 = vmatpush.msra.mxu0 %v640
        %1223 = vmatpush.msra.mxu0 %v636
        %1224 = vmatpush.msra.mxu0 %v632
        %1225 = vmatpush.msra.mxu0 %v628
        %1226 = vmatpush.msra.mxu0 %v624
        %1227 = vmatpush.msra.mxu0 %v620
        %1228 = vmatpush.msra.mxu0 %v616
        %1229 = vmatpush.msra.mxu0 %v612
        %1230 = vmatpush.msra.mxu0 %v608
        %1231 = vmatmul.f32.gmra.mxu0 %v1143
        %v1232 = vpop.f32.mrf.mxu0
        %v1233 = vadd.f32 0.0, %v1232
        %1234 = vdwg.mxu0
        %v1235 = vadd.f32 %v1150, %v1173
        %v1236 = vadd.f32 %v1151, %v1193
        %v1237 = vadd.f32 %v1152, %v1213
        %v1238 = vadd.f32 %v1153, %v1233
        %v1239 = vxor.u32 %v1235, 2147483648
        %v1240 = vxor.u32 %v1236, 2147483648
        %v1241 = vxor.u32 %v1237, 2147483648
        %v1242 = vmul.f32 %v1239, 1.442695
        %v1243 = vpow.pop %v1242
        %v1244 = vmul.f32 %v1240, 1.442695
        %v1245 = vpow.pop %v1244
        %v1246 = vmul.f32 %v1241, 1.442695
        %v1247 = vpow.pop %v1246
        %v1248 = vadd.f32 %v1243, 1.0
        %v1249 = vadd.f32 %v1245, 1.0
        %v1250 = vadd.f32 %v1247, 1.0
        %v1251 = vrcp.pop %v1248
        %v1252 = vmul.f32 %v1248, %v1251
        %v1253 = vsub.f32 1.0, %v1252
        %v1254 = vmul.f32 %v1251, %v1253
        %v1255 = vadd.f32 %v1251, %v1254
        %vm1256 = vweird.f32 %v1248
        %vm1257 = vweird.f32 %v1251
        %vm1258 = vmor %vm1256, %vm1257
        %v1259 = vsel %vm1258, %v1251, %v1255
        %v1260 = vand.u32 2147483647, %v1248
        %vm1261 = vcmp.eq.f32.partialorder %v1260, 8.507059e+37
        %v1262 = vand.u32 %v1248, 2147483648
        %v1263 = vor.u32 1.1754944e-38, %v1262
        %v1264 = vsel %vm1261, %v1263, %v1259
        %v1265 = vmul.f32 1.0, %v1264
        %v1266 = vrcp.pop %v1249
        %v1267 = vmul.f32 %v1249, %v1266
        %v1268 = vsub.f32 1.0, %v1267
        %v1269 = vmul.f32 %v1266, %v1268
        %v1270 = vadd.f32 %v1266, %v1269
        %vm1271 = vweird.f32 %v1249
        %vm1272 = vweird.f32 %v1266
        %vm1273 = vmor %vm1271, %vm1272
        %v1274 = vsel %vm1273, %v1266, %v1270
        %v1275 = vand.u32 2147483647, %v1249
        %vm1276 = vcmp.eq.f32.partialorder %v1275, 8.507059e+37
        %v1277 = vand.u32 %v1249, 2147483648
        %v1278 = vor.u32 1.1754944e-38, %v1277
        %v1279 = vsel %vm1276, %v1278, %v1274
        %v1280 = vmul.f32 1.0, %v1279
        %v1281 = vrcp.pop %v1250
        %v1282 = vmul.f32 %v1250, %v1281
        %v1283 = vsub.f32 1.0, %v1282
        %v1284 = vmul.f32 %v1281, %v1283
        %v1285 = vadd.f32 %v1281, %v1284
        %vm1286 = vweird.f32 %v1250
        %vm1287 = vweird.f32 %v1281
        %vm1288 = vmor %vm1286, %vm1287
        %v1289 = vsel %vm1288, %v1281, %v1285
        %v1290 = vand.u32 2147483647, %v1250
        %vm1291 = vcmp.eq.f32.partialorder %v1290, 8.507059e+37
        %v1292 = vand.u32 %v1250, 2147483648
        %v1293 = vor.u32 1.1754944e-38, %v1292
        %v1294 = vsel %vm1291, %v1293, %v1289
        %v1295 = vmul.f32 1.0, %v1294
        %v1296 = vtanh.pop %v1238
        %v1297 = vmul.f32 %v1280, %v1141
        %v1298 = vmul.f32 %v1265, %v1296
        %v1299 = vadd.f32 %v1297, %v1298
        %v1300 = vtanh.pop %v1299
        %v1301 = vmul.f32 %v1295, %v1300
        %v1302 = vadd.f32 %v1301, %v1154
        %s1303 = scalar_lea.vmem %s259, 24
        %1304 = vst [vmem:[%s1303] sm:$0xff] %v1302
        %s1305 = smul.u32 4, 5
        %s1306 = smul.addr %s1305, 8
        %s1307 = scalar_lea.vmem %s673, %s1306 [#allocation4]
        %v1308 = vld [vmem:[%s1307] sm:$0xff]
        %v1309 = vld [vmem:[%s1307 + $0x8] sm:$0xff]
        %v1310 = vld [vmem:[%s1307 + $0x10] sm:$0xff]
        %v1311 = vld [vmem:[%s1307 + $0x18] sm:$0xff]
        %v1312 = vld [vmem:[%s1307 + $0x20] sm:$0xff]
        %1313 = vmatpush.msra.mxu0 %v665
        %1314 = vmatpush.msra.mxu0 %v661
        %1315 = vmatpush.msra.mxu0 %v657
        %1316 = vmatpush.msra.mxu0 %v653
        %1317 = vmatpush.msra.mxu0 %v649
        %1318 = vmatpush.msra.mxu0 %v645
        %1319 = vmatpush.msra.mxu0 %v641
        %1320 = vmatpush.msra.mxu0 %v637
        %1321 = vmatpush.msra.mxu0 %v633
        %1322 = vmatpush.msra.mxu0 %v629
        %1323 = vmatpush.msra.mxu0 %v625
        %1324 = vmatpush.msra.mxu0 %v621
        %1325 = vmatpush.msra.mxu0 %v617
        %1326 = vmatpush.msra.mxu0 %v613
        %1327 = vmatpush.msra.mxu0 %v609
        %1328 = vmatpush.msra.mxu0 %v605
        %1329 = vmatmul.f32.gmra.mxu0 %v1301
        %v1330 = vpop.f32.mrf.mxu0
        %v1331 = vadd.f32 0.0, %v1330
        %1332 = vdwg.mxu0
        %1333 = vmatpush.msra.mxu0 %v666
        %1334 = vmatpush.msra.mxu0 %v662
        %1335 = vmatpush.msra.mxu0 %v658
        %1336 = vmatpush.msra.mxu0 %v654
        %1337 = vmatpush.msra.mxu0 %v650
        %1338 = vmatpush.msra.mxu0 %v646
        %1339 = vmatpush.msra.mxu0 %v642
        %1340 = vmatpush.msra.mxu0 %v638
        %1341 = vmatpush.msra.mxu0 %v634
        %1342 = vmatpush.msra.mxu0 %v630
        %1343 = vmatpush.msra.mxu0 %v626
        %1344 = vmatpush.msra.mxu0 %v622
        %1345 = vmatpush.msra.mxu0 %v618
        %1346 = vmatpush.msra.mxu0 %v614
        %1347 = vmatpush.msra.mxu0 %v610
        %1348 = vmatpush.msra.mxu0 %v606
        %1349 = vmatmul.f32.gmra.mxu0 %v1301
        %v1350 = vpop.f32.mrf.mxu0
        %v1351 = vadd.f32 0.0, %v1350
        %1352 = vdwg.mxu0
        %1353 = vmatpush.msra.mxu0 %v667
        %1354 = vmatpush.msra.mxu0 %v663
        %1355 = vmatpush.msra.mxu0 %v659
        %1356 = vmatpush.msra.mxu0 %v655
        %1357 = vmatpush.msra.mxu0 %v651
        %1358 = vmatpush.msra.mxu0 %v647
        %1359 = vmatpush.msra.mxu0 %v643
        %1360 = vmatpush.msra.mxu0 %v639
        %1361 = vmatpush.msra.mxu0 %v635
        %1362 = vmatpush.msra.mxu0 %v631
        %1363 = vmatpush.msra.mxu0 %v627
        %1364 = vmatpush.msra.mxu0 %v623
        %1365 = vmatpush.msra.mxu0 %v619
        %1366 = vmatpush.msra.mxu0 %v615
        %1367 = vmatpush.msra.mxu0 %v611
        %1368 = vmatpush.msra.mxu0 %v607
        %1369 = vmatmul.f32.gmra.mxu0 %v1301
        %v1370 = vpop.f32.mrf.mxu0
        %v1371 = vadd.f32 0.0, %v1370
        %1372 = vdwg.mxu0
        %1373 = vmatpush.msra.mxu0 %v668
        %1374 = vmatpush.msra.mxu0 %v664
        %1375 = vmatpush.msra.mxu0 %v660
        %1376 = vmatpush.msra.mxu0 %v656
        %1377 = vmatpush.msra.mxu0 %v652
        %1378 = vmatpush.msra.mxu0 %v648
        %1379 = vmatpush.msra.mxu0 %v644
        %1380 = vmatpush.msra.mxu0 %v640
        %1381 = vmatpush.msra.mxu0 %v636
        %1382 = vmatpush.msra.mxu0 %v632
        %1383 = vmatpush.msra.mxu0 %v628
        %1384 = vmatpush.msra.mxu0 %v624
        %1385 = vmatpush.msra.mxu0 %v620
        %1386 = vmatpush.msra.mxu0 %v616
        %1387 = vmatpush.msra.mxu0 %v612
        %1388 = vmatpush.msra.mxu0 %v608
        %1389 = vmatmul.f32.gmra.mxu0 %v1301
        %v1390 = vpop.f32.mrf.mxu0
        %v1391 = vadd.f32 0.0, %v1390
        %1392 = vdwg.mxu0
        %v1393 = vadd.f32 %v1308, %v1331
        %v1394 = vadd.f32 %v1309, %v1351
        %v1395 = vadd.f32 %v1310, %v1371
        %v1396 = vadd.f32 %v1311, %v1391
        %v1397 = vxor.u32 %v1393, 2147483648
        %v1398 = vxor.u32 %v1394, 2147483648
        %v1399 = vxor.u32 %v1395, 2147483648
        %v1400 = vmul.f32 %v1397, 1.442695
        %v1401 = vpow.pop %v1400
        %v1402 = vmul.f32 %v1398, 1.442695
        %v1403 = vpow.pop %v1402
        %v1404 = vmul.f32 %v1399, 1.442695
        %v1405 = vpow.pop %v1404
        %v1406 = vadd.f32 %v1401, 1.0
        %v1407 = vadd.f32 %v1403, 1.0
        %v1408 = vadd.f32 %v1405, 1.0
        %v1409 = vrcp.pop %v1406
        %v1410 = vmul.f32 %v1406, %v1409
        %v1411 = vsub.f32 1.0, %v1410
        %v1412 = vmul.f32 %v1409, %v1411
        %v1413 = vadd.f32 %v1409, %v1412
        %vm1414 = vweird.f32 %v1406
        %vm1415 = vweird.f32 %v1409
        %vm1416 = vmor %vm1414, %vm1415
        %v1417 = vsel %vm1416, %v1409, %v1413
        %v1418 = vand.u32 2147483647, %v1406
        %vm1419 = vcmp.eq.f32.partialorder %v1418, 8.507059e+37
        %v1420 = vand.u32 %v1406, 2147483648
        %v1421 = vor.u32 1.1754944e-38, %v1420
        %v1422 = vsel %vm1419, %v1421, %v1417
        %v1423 = vmul.f32 1.0, %v1422
        %v1424 = vrcp.pop %v1407
        %v1425 = vmul.f32 %v1407, %v1424
        %v1426 = vsub.f32 1.0, %v1425
        %v1427 = vmul.f32 %v1424, %v1426
        %v1428 = vadd.f32 %v1424, %v1427
        %vm1429 = vweird.f32 %v1407
        %vm1430 = vweird.f32 %v1424
        %vm1431 = vmor %vm1429, %vm1430
        %v1432 = vsel %vm1431, %v1424, %v1428
        %v1433 = vand.u32 2147483647, %v1407
        %vm1434 = vcmp.eq.f32.partialorder %v1433, 8.507059e+37
        %v1435 = vand.u32 %v1407, 2147483648
        %v1436 = vor.u32 1.1754944e-38, %v1435
        %v1437 = vsel %vm1434, %v1436, %v1432
        %v1438 = vmul.f32 1.0, %v1437
        %v1439 = vrcp.pop %v1408
        %v1440 = vmul.f32 %v1408, %v1439
        %v1441 = vsub.f32 1.0, %v1440
        %v1442 = vmul.f32 %v1439, %v1441
        %v1443 = vadd.f32 %v1439, %v1442
        %vm1444 = vweird.f32 %v1408
        %vm1445 = vweird.f32 %v1439
        %vm1446 = vmor %vm1444, %vm1445
        %v1447 = vsel %vm1446, %v1439, %v1443
        %v1448 = vand.u32 2147483647, %v1408
        %vm1449 = vcmp.eq.f32.partialorder %v1448, 8.507059e+37
        %v1450 = vand.u32 %v1408, 2147483648
        %v1451 = vor.u32 1.1754944e-38, %v1450
        %v1452 = vsel %vm1449, %v1451, %v1447
        %v1453 = vmul.f32 1.0, %v1452
        %v1454 = vtanh.pop %v1396
        %v1455 = vmul.f32 %v1438, %v1299
        %v1456 = vmul.f32 %v1423, %v1454
        %v1457 = vadd.f32 %v1455, %v1456
        %v1458 = vtanh.pop %v1457
        %v1459 = vmul.f32 %v1453, %v1458
        %v1460 = vadd.f32 %v1459, %v1312
        %s1461 = scalar_lea.vmem %s259, 32
        %1462 = vst [vmem:[%s1461] sm:$0xff] %v1460
        %s1463 = smul.u32 5, 5
        %s1464 = smul.addr %s1463, 8
        %s1465 = scalar_lea.vmem %s673, %s1464 [#allocation4]
        %v1466 = vld [vmem:[%s1465] sm:$0xff]
        %v1467 = vld [vmem:[%s1465 + $0x8] sm:$0xff]
        %v1468 = vld [vmem:[%s1465 + $0x10] sm:$0xff]
        %v1469 = vld [vmem:[%s1465 + $0x18] sm:$0xff]
        %v1470 = vld [vmem:[%s1465 + $0x20] sm:$0xff]
        %1471 = vmatpush.msra.mxu0 %v665
        %1472 = vmatpush.msra.mxu0 %v661
        %1473 = vmatpush.msra.mxu0 %v657
        %1474 = vmatpush.msra.mxu0 %v653
        %1475 = vmatpush.msra.mxu0 %v649
        %1476 = vmatpush.msra.mxu0 %v645
        %1477 = vmatpush.msra.mxu0 %v641
        %1478 = vmatpush.msra.mxu0 %v637
        %1479 = vmatpush.msra.mxu0 %v633
        %1480 = vmatpush.msra.mxu0 %v629
        %1481 = vmatpush.msra.mxu0 %v625
        %1482 = vmatpush.msra.mxu0 %v621
        %1483 = vmatpush.msra.mxu0 %v617
        %1484 = vmatpush.msra.mxu0 %v613
        %1485 = vmatpush.msra.mxu0 %v609
        %1486 = vmatpush.msra.mxu0 %v605
        %1487 = vmatmul.f32.gmra.mxu0 %v1459
        %v1488 = vpop.f32.mrf.mxu0
        %v1489 = vadd.f32 0.0, %v1488
        %1490 = vdwg.mxu0
        %1491 = vmatpush.msra.mxu0 %v666
        %1492 = vmatpush.msra.mxu0 %v662
        %1493 = vmatpush.msra.mxu0 %v658
        %1494 = vmatpush.msra.mxu0 %v654
        %1495 = vmatpush.msra.mxu0 %v650
        %1496 = vmatpush.msra.mxu0 %v646
        %1497 = vmatpush.msra.mxu0 %v642
        %1498 = vmatpush.msra.mxu0 %v638
        %1499 = vmatpush.msra.mxu0 %v634
        %1500 = vmatpush.msra.mxu0 %v630
        %1501 = vmatpush.msra.mxu0 %v626
        %1502 = vmatpush.msra.mxu0 %v622
        %1503 = vmatpush.msra.mxu0 %v618
        %1504 = vmatpush.msra.mxu0 %v614
        %1505 = vmatpush.msra.mxu0 %v610
        %1506 = vmatpush.msra.mxu0 %v606
        %1507 = vmatmul.f32.gmra.mxu0 %v1459
        %v1508 = vpop.f32.mrf.mxu0
        %v1509 = vadd.f32 0.0, %v1508
        %1510 = vdwg.mxu0
        %1511 = vmatpush.msra.mxu0 %v667
        %1512 = vmatpush.msra.mxu0 %v663
        %1513 = vmatpush.msra.mxu0 %v659
        %1514 = vmatpush.msra.mxu0 %v655
        %1515 = vmatpush.msra.mxu0 %v651
        %1516 = vmatpush.msra.mxu0 %v647
        %1517 = vmatpush.msra.mxu0 %v643
        %1518 = vmatpush.msra.mxu0 %v639
        %1519 = vmatpush.msra.mxu0 %v635
        %1520 = vmatpush.msra.mxu0 %v631
        %1521 = vmatpush.msra.mxu0 %v627
        %1522 = vmatpush.msra.mxu0 %v623
        %1523 = vmatpush.msra.mxu0 %v619
        %1524 = vmatpush.msra.mxu0 %v615
        %1525 = vmatpush.msra.mxu0 %v611
        %1526 = vmatpush.msra.mxu0 %v607
        %1527 = vmatmul.f32.gmra.mxu0 %v1459
        %v1528 = vpop.f32.mrf.mxu0
        %v1529 = vadd.f32 0.0, %v1528
        %1530 = vdwg.mxu0
        %1531 = vmatpush.msra.mxu0 %v668
        %1532 = vmatpush.msra.mxu0 %v664
        %1533 = vmatpush.msra.mxu0 %v660
        %1534 = vmatpush.msra.mxu0 %v656
        %1535 = vmatpush.msra.mxu0 %v652
        %1536 = vmatpush.msra.mxu0 %v648
        %1537 = vmatpush.msra.mxu0 %v644
        %1538 = vmatpush.msra.mxu0 %v640
        %1539 = vmatpush.msra.mxu0 %v636
        %1540 = vmatpush.msra.mxu0 %v632
        %1541 = vmatpush.msra.mxu0 %v628
        %1542 = vmatpush.msra.mxu0 %v624
        %1543 = vmatpush.msra.mxu0 %v620
        %1544 = vmatpush.msra.mxu0 %v616
        %1545 = vmatpush.msra.mxu0 %v612
        %1546 = vmatpush.msra.mxu0 %v608
        %1547 = vmatmul.f32.gmra.mxu0 %v1459
        %v1548 = vpop.f32.mrf.mxu0
        %v1549 = vadd.f32 0.0, %v1548
        %1550 = vdwg.mxu0
        %v1551 = vadd.f32 %v1466, %v1489
        %v1552 = vadd.f32 %v1467, %v1509
        %v1553 = vadd.f32 %v1468, %v1529
        %v1554 = vadd.f32 %v1469, %v1549
        %v1555 = vxor.u32 %v1551, 2147483648
        %v1556 = vxor.u32 %v1552, 2147483648
        %v1557 = vxor.u32 %v1553, 2147483648
        %v1558 = vmul.f32 %v1555, 1.442695
        %v1559 = vpow.pop %v1558
        %v1560 = vmul.f32 %v1556, 1.442695
        %v1561 = vpow.pop %v1560
        %v1562 = vmul.f32 %v1557, 1.442695
        %v1563 = vpow.pop %v1562
        %v1564 = vadd.f32 %v1559, 1.0
        %v1565 = vadd.f32 %v1561, 1.0
        %v1566 = vadd.f32 %v1563, 1.0
        %v1567 = vrcp.pop %v1564
        %v1568 = vmul.f32 %v1564, %v1567
        %v1569 = vsub.f32 1.0, %v1568
        %v1570 = vmul.f32 %v1567, %v1569
        %v1571 = vadd.f32 %v1567, %v1570
        %vm1572 = vweird.f32 %v1564
        %vm1573 = vweird.f32 %v1567
        %vm1574 = vmor %vm1572, %vm1573
        %v1575 = vsel %vm1574, %v1567, %v1571
        %v1576 = vand.u32 2147483647, %v1564
        %vm1577 = vcmp.eq.f32.partialorder %v1576, 8.507059e+37
        %v1578 = vand.u32 %v1564, 2147483648
        %v1579 = vor.u32 1.1754944e-38, %v1578
        %v1580 = vsel %vm1577, %v1579, %v1575
        %v1581 = vmul.f32 1.0, %v1580
        %v1582 = vrcp.pop %v1565
        %v1583 = vmul.f32 %v1565, %v1582
        %v1584 = vsub.f32 1.0, %v1583
        %v1585 = vmul.f32 %v1582, %v1584
        %v1586 = vadd.f32 %v1582, %v1585
        %vm1587 = vweird.f32 %v1565
        %vm1588 = vweird.f32 %v1582
        %vm1589 = vmor %vm1587, %vm1588
        %v1590 = vsel %vm1589, %v1582, %v1586
        %v1591 = vand.u32 2147483647, %v1565
        %vm1592 = vcmp.eq.f32.partialorder %v1591, 8.507059e+37
        %v1593 = vand.u32 %v1565, 2147483648
        %v1594 = vor.u32 1.1754944e-38, %v1593
        %v1595 = vsel %vm1592, %v1594, %v1590
        %v1596 = vmul.f32 1.0, %v1595
        %v1597 = vrcp.pop %v1566
        %v1598 = vmul.f32 %v1566, %v1597
        %v1599 = vsub.f32 1.0, %v1598
        %v1600 = vmul.f32 %v1597, %v1599
        %v1601 = vadd.f32 %v1597, %v1600
        %vm1602 = vweird.f32 %v1566
        %vm1603 = vweird.f32 %v1597
        %vm1604 = vmor %vm1602, %vm1603
        %v1605 = vsel %vm1604, %v1597, %v1601
        %v1606 = vand.u32 2147483647, %v1566
        %vm1607 = vcmp.eq.f32.partialorder %v1606, 8.507059e+37
        %v1608 = vand.u32 %v1566, 2147483648
        %v1609 = vor.u32 1.1754944e-38, %v1608
        %v1610 = vsel %vm1607, %v1609, %v1605
        %v1611 = vmul.f32 1.0, %v1610
        %v1612 = vtanh.pop %v1554
        %v1613 = vmul.f32 %v1596, %v1457
        %v1614 = vmul.f32 %v1581, %v1612
        %v1615 = vadd.f32 %v1613, %v1614
        %v1616 = vtanh.pop %v1615
        %v1617 = vmul.f32 %v1611, %v1616
        %v1618 = vadd.f32 %v1617, %v1470
        %s1619 = scalar_lea.vmem %s259, 40
        %1620 = vst [vmem:[%s1619] sm:$0xff] %v1618
        %s1621 = smul.u32 6, 5
        %s1622 = smul.addr %s1621, 8
        %s1623 = scalar_lea.vmem %s673, %s1622 [#allocation4]
        %v1624 = vld [vmem:[%s1623] sm:$0xff]
        %v1625 = vld [vmem:[%s1623 + $0x8] sm:$0xff]
        %v1626 = vld [vmem:[%s1623 + $0x10] sm:$0xff]
        %v1627 = vld [vmem:[%s1623 + $0x18] sm:$0xff]
        %v1628 = vld [vmem:[%s1623 + $0x20] sm:$0xff]
        %1629 = vmatpush.msra.mxu0 %v665
        %1630 = vmatpush.msra.mxu0 %v661
        %1631 = vmatpush.msra.mxu0 %v657
        %1632 = vmatpush.msra.mxu0 %v653
        %1633 = vmatpush.msra.mxu0 %v649
        %1634 = vmatpush.msra.mxu0 %v645
        %1635 = vmatpush.msra.mxu0 %v641
        %1636 = vmatpush.msra.mxu0 %v637
        %1637 = vmatpush.msra.mxu0 %v633
        %1638 = vmatpush.msra.mxu0 %v629
        %1639 = vmatpush.msra.mxu0 %v625
        %1640 = vmatpush.msra.mxu0 %v621
        %1641 = vmatpush.msra.mxu0 %v617
        %1642 = vmatpush.msra.mxu0 %v613
        %1643 = vmatpush.msra.mxu0 %v609
        %1644 = vmatpush.msra.mxu0 %v605
        %1645 = vmatmul.f32.gmra.mxu0 %v1617
        %v1646 = vpop.f32.mrf.mxu0
        %v1647 = vadd.f32 0.0, %v1646
        %1648 = vdwg.mxu0
        %1649 = vmatpush.msra.mxu0 %v666
        %1650 = vmatpush.msra.mxu0 %v662
        %1651 = vmatpush.msra.mxu0 %v658
        %1652 = vmatpush.msra.mxu0 %v654
        %1653 = vmatpush.msra.mxu0 %v650
        %1654 = vmatpush.msra.mxu0 %v646
        %1655 = vmatpush.msra.mxu0 %v642
        %1656 = vmatpush.msra.mxu0 %v638
        %1657 = vmatpush.msra.mxu0 %v634
        %1658 = vmatpush.msra.mxu0 %v630
        %1659 = vmatpush.msra.mxu0 %v626
        %1660 = vmatpush.msra.mxu0 %v622
        %1661 = vmatpush.msra.mxu0 %v618
        %1662 = vmatpush.msra.mxu0 %v614
        %1663 = vmatpush.msra.mxu0 %v610
        %1664 = vmatpush.msra.mxu0 %v606
        %1665 = vmatmul.f32.gmra.mxu0 %v1617
        %v1666 = vpop.f32.mrf.mxu0
        %v1667 = vadd.f32 0.0, %v1666
        %1668 = vdwg.mxu0
        %1669 = vmatpush.msra.mxu0 %v667
        %1670 = vmatpush.msra.mxu0 %v663
        %1671 = vmatpush.msra.mxu0 %v659
        %1672 = vmatpush.msra.mxu0 %v655
        %1673 = vmatpush.msra.mxu0 %v651
        %1674 = vmatpush.msra.mxu0 %v647
        %1675 = vmatpush.msra.mxu0 %v643
        %1676 = vmatpush.msra.mxu0 %v639
        %1677 = vmatpush.msra.mxu0 %v635
        %1678 = vmatpush.msra.mxu0 %v631
        %1679 = vmatpush.msra.mxu0 %v627
        %1680 = vmatpush.msra.mxu0 %v623
        %1681 = vmatpush.msra.mxu0 %v619
        %1682 = vmatpush.msra.mxu0 %v615
        %1683 = vmatpush.msra.mxu0 %v611
        %1684 = vmatpush.msra.mxu0 %v607
        %1685 = vmatmul.f32.gmra.mxu0 %v1617
        %v1686 = vpop.f32.mrf.mxu0
        %v1687 = vadd.f32 0.0, %v1686
        %1688 = vdwg.mxu0
        %1689 = vmatpush.msra.mxu0 %v668
        %1690 = vmatpush.msra.mxu0 %v664
        %1691 = vmatpush.msra.mxu0 %v660
        %1692 = vmatpush.msra.mxu0 %v656
        %1693 = vmatpush.msra.mxu0 %v652
        %1694 = vmatpush.msra.mxu0 %v648
        %1695 = vmatpush.msra.mxu0 %v644
        %1696 = vmatpush.msra.mxu0 %v640
        %1697 = vmatpush.msra.mxu0 %v636
        %1698 = vmatpush.msra.mxu0 %v632
        %1699 = vmatpush.msra.mxu0 %v628
        %1700 = vmatpush.msra.mxu0 %v624
        %1701 = vmatpush.msra.mxu0 %v620
        %1702 = vmatpush.msra.mxu0 %v616
        %1703 = vmatpush.msra.mxu0 %v612
        %1704 = vmatpush.msra.mxu0 %v608
        %1705 = vmatmul.f32.gmra.mxu0 %v1617
        %v1706 = vpop.f32.mrf.mxu0
        %v1707 = vadd.f32 0.0, %v1706
        %1708 = vdwg.mxu0
        %v1709 = vadd.f32 %v1624, %v1647
        %v1710 = vadd.f32 %v1625, %v1667
        %v1711 = vadd.f32 %v1626, %v1687
        %v1712 = vadd.f32 %v1627, %v1707
        %v1713 = vxor.u32 %v1709, 2147483648
        %v1714 = vxor.u32 %v1710, 2147483648
        %v1715 = vxor.u32 %v1711, 2147483648
        %v1716 = vmul.f32 %v1713, 1.442695
        %v1717 = vpow.pop %v1716
        %v1718 = vmul.f32 %v1714, 1.442695
        %v1719 = vpow.pop %v1718
        %v1720 = vmul.f32 %v1715, 1.442695
        %v1721 = vpow.pop %v1720
        %v1722 = vadd.f32 %v1717, 1.0
        %v1723 = vadd.f32 %v1719, 1.0
        %v1724 = vadd.f32 %v1721, 1.0
        %v1725 = vrcp.pop %v1722
        %v1726 = vmul.f32 %v1722, %v1725
        %v1727 = vsub.f32 1.0, %v1726
        %v1728 = vmul.f32 %v1725, %v1727
        %v1729 = vadd.f32 %v1725, %v1728
        %vm1730 = vweird.f32 %v1722
        %vm1731 = vweird.f32 %v1725
        %vm1732 = vmor %vm1730, %vm1731
        %v1733 = vsel %vm1732, %v1725, %v1729
        %v1734 = vand.u32 2147483647, %v1722
        %vm1735 = vcmp.eq.f32.partialorder %v1734, 8.507059e+37
        %v1736 = vand.u32 %v1722, 2147483648
        %v1737 = vor.u32 1.1754944e-38, %v1736
        %v1738 = vsel %vm1735, %v1737, %v1733
        %v1739 = vmul.f32 1.0, %v1738
        %v1740 = vrcp.pop %v1723
        %v1741 = vmul.f32 %v1723, %v1740
        %v1742 = vsub.f32 1.0, %v1741
        %v1743 = vmul.f32 %v1740, %v1742
        %v1744 = vadd.f32 %v1740, %v1743
        %vm1745 = vweird.f32 %v1723
        %vm1746 = vweird.f32 %v1740
        %vm1747 = vmor %vm1745, %vm1746
        %v1748 = vsel %vm1747, %v1740, %v1744
        %v1749 = vand.u32 2147483647, %v1723
        %vm1750 = vcmp.eq.f32.partialorder %v1749, 8.507059e+37
        %v1751 = vand.u32 %v1723, 2147483648
        %v1752 = vor.u32 1.1754944e-38, %v1751
        %v1753 = vsel %vm1750, %v1752, %v1748
        %v1754 = vmul.f32 1.0, %v1753
        %v1755 = vrcp.pop %v1724
        %v1756 = vmul.f32 %v1724, %v1755
        %v1757 = vsub.f32 1.0, %v1756
        %v1758 = vmul.f32 %v1755, %v1757
        %v1759 = vadd.f32 %v1755, %v1758
        %vm1760 = vweird.f32 %v1724
        %vm1761 = vweird.f32 %v1755
        %vm1762 = vmor %vm1760, %vm1761
        %v1763 = vsel %vm1762, %v1755, %v1759
        %v1764 = vand.u32 2147483647, %v1724
        %vm1765 = vcmp.eq.f32.partialorder %v1764, 8.507059e+37
        %v1766 = vand.u32 %v1724, 2147483648
        %v1767 = vor.u32 1.1754944e-38, %v1766
        %v1768 = vsel %vm1765, %v1767, %v1763
        %v1769 = vmul.f32 1.0, %v1768
        %v1770 = vtanh.pop %v1712
        %v1771 = vmul.f32 %v1754, %v1615
        %v1772 = vmul.f32 %v1739, %v1770
        %v1773 = vadd.f32 %v1771, %v1772
        %v1774 = vtanh.pop %v1773
        %v1775 = vmul.f32 %v1769, %v1774
        %v1776 = vadd.f32 %v1775, %v1628
        %s1777 = scalar_lea.vmem %s259, 48
        %1778 = vst [vmem:[%s1777] sm:$0xff] %v1776
        %s1779 = smul.u32 7, 5
        %s1780 = smul.addr %s1779, 8
        %s1781 = scalar_lea.vmem %s673, %s1780 [#allocation4]
        %v1782 = vld [vmem:[%s1781] sm:$0xff]
        %v1783 = vld [vmem:[%s1781 + $0x8] sm:$0xff]
        %v1784 = vld [vmem:[%s1781 + $0x10] sm:$0xff]
        %v1785 = vld [vmem:[%s1781 + $0x18] sm:$0xff]
        %v1786 = vld [vmem:[%s1781 + $0x20] sm:$0xff]
        %1787 = vmatpush.msra.mxu0 %v665
        %1788 = vmatpush.msra.mxu0 %v661
        %1789 = vmatpush.msra.mxu0 %v657
        %1790 = vmatpush.msra.mxu0 %v653
        %1791 = vmatpush.msra.mxu0 %v649
        %1792 = vmatpush.msra.mxu0 %v645
        %1793 = vmatpush.msra.mxu0 %v641
        %1794 = vmatpush.msra.mxu0 %v637
        %1795 = vmatpush.msra.mxu0 %v633
        %1796 = vmatpush.msra.mxu0 %v629
        %1797 = vmatpush.msra.mxu0 %v625
        %1798 = vmatpush.msra.mxu0 %v621
        %1799 = vmatpush.msra.mxu0 %v617
        %1800 = vmatpush.msra.mxu0 %v613
        %1801 = vmatpush.msra.mxu0 %v609
        %1802 = vmatpush.msra.mxu0 %v605
        %1803 = vmatmul.f32.gmra.mxu0 %v1775
        %v1804 = vpop.f32.mrf.mxu0
        %v1805 = vadd.f32 0.0, %v1804
        %1806 = vdwg.mxu0
        %1807 = vmatpush.msra.mxu0 %v666
        %1808 = vmatpush.msra.mxu0 %v662
        %1809 = vmatpush.msra.mxu0 %v658
        %1810 = vmatpush.msra.mxu0 %v654
        %1811 = vmatpush.msra.mxu0 %v650
        %1812 = vmatpush.msra.mxu0 %v646
        %1813 = vmatpush.msra.mxu0 %v642
        %1814 = vmatpush.msra.mxu0 %v638
        %1815 = vmatpush.msra.mxu0 %v634
        %1816 = vmatpush.msra.mxu0 %v630
        %1817 = vmatpush.msra.mxu0 %v626
        %1818 = vmatpush.msra.mxu0 %v622
        %1819 = vmatpush.msra.mxu0 %v618
        %1820 = vmatpush.msra.mxu0 %v614
        %1821 = vmatpush.msra.mxu0 %v610
        %1822 = vmatpush.msra.mxu0 %v606
        %1823 = vmatmul.f32.gmra.mxu0 %v1775
        %v1824 = vpop.f32.mrf.mxu0
        %v1825 = vadd.f32 0.0, %v1824
        %1826 = vdwg.mxu0
        %1827 = vmatpush.msra.mxu0 %v667
        %1828 = vmatpush.msra.mxu0 %v663
        %1829 = vmatpush.msra.mxu0 %v659
        %1830 = vmatpush.msra.mxu0 %v655
        %1831 = vmatpush.msra.mxu0 %v651
        %1832 = vmatpush.msra.mxu0 %v647
        %1833 = vmatpush.msra.mxu0 %v643
        %1834 = vmatpush.msra.mxu0 %v639
        %1835 = vmatpush.msra.mxu0 %v635
        %1836 = vmatpush.msra.mxu0 %v631
        %1837 = vmatpush.msra.mxu0 %v627
        %1838 = vmatpush.msra.mxu0 %v623
        %1839 = vmatpush.msra.mxu0 %v619
        %1840 = vmatpush.msra.mxu0 %v615
        %1841 = vmatpush.msra.mxu0 %v611
        %1842 = vmatpush.msra.mxu0 %v607
        %1843 = vmatmul.f32.gmra.mxu0 %v1775
        %v1844 = vpop.f32.mrf.mxu0
        %v1845 = vadd.f32 0.0, %v1844
        %1846 = vdwg.mxu0
        %1847 = vmatpush.msra.mxu0 %v668
        %1848 = vmatpush.msra.mxu0 %v664
        %1849 = vmatpush.msra.mxu0 %v660
        %1850 = vmatpush.msra.mxu0 %v656
        %1851 = vmatpush.msra.mxu0 %v652
        %1852 = vmatpush.msra.mxu0 %v648
        %1853 = vmatpush.msra.mxu0 %v644
        %1854 = vmatpush.msra.mxu0 %v640
        %1855 = vmatpush.msra.mxu0 %v636
        %1856 = vmatpush.msra.mxu0 %v632
        %1857 = vmatpush.msra.mxu0 %v628
        %1858 = vmatpush.msra.mxu0 %v624
        %1859 = vmatpush.msra.mxu0 %v620
        %1860 = vmatpush.msra.mxu0 %v616
        %1861 = vmatpush.msra.mxu0 %v612
        %1862 = vmatpush.msra.mxu0 %v608
        %1863 = vmatmul.f32.gmra.mxu0 %v1775
        %v1864 = vpop.f32.mrf.mxu0
        %v1865 = vadd.f32 0.0, %v1864
        %1866 = vdwg.mxu0
        %v1867 = vadd.f32 %v1782, %v1805
        %v1868 = vadd.f32 %v1783, %v1825
        %v1869 = vadd.f32 %v1784, %v1845
        %v1870 = vadd.f32 %v1785, %v1865
        %v1871 = vxor.u32 %v1867, 2147483648
        %v1872 = vxor.u32 %v1868, 2147483648
        %v1873 = vxor.u32 %v1869, 2147483648
        %v1874 = vmul.f32 %v1871, 1.442695
        %v1875 = vpow.pop %v1874
        %v1876 = vmul.f32 %v1872, 1.442695
        %v1877 = vpow.pop %v1876
        %v1878 = vmul.f32 %v1873, 1.442695
        %v1879 = vpow.pop %v1878
        %v1880 = vadd.f32 %v1875, 1.0
        %v1881 = vadd.f32 %v1877, 1.0
        %v1882 = vadd.f32 %v1879, 1.0
        %v1883 = vrcp.pop %v1880
        %v1884 = vmul.f32 %v1880, %v1883
        %v1885 = vsub.f32 1.0, %v1884
        %v1886 = vmul.f32 %v1883, %v1885
        %v1887 = vadd.f32 %v1883, %v1886
        %vm1888 = vweird.f32 %v1880
        %vm1889 = vweird.f32 %v1883
        %vm1890 = vmor %vm1888, %vm1889
        %v1891 = vsel %vm1890, %v1883, %v1887
        %v1892 = vand.u32 2147483647, %v1880
        %vm1893 = vcmp.eq.f32.partialorder %v1892, 8.507059e+37
        %v1894 = vand.u32 %v1880, 2147483648
        %v1895 = vor.u32 1.1754944e-38, %v1894
        %v1896 = vsel %vm1893, %v1895, %v1891
        %v1897 = vmul.f32 1.0, %v1896
        %v1898 = vrcp.pop %v1881
        %v1899 = vmul.f32 %v1881, %v1898
        %v1900 = vsub.f32 1.0, %v1899
        %v1901 = vmul.f32 %v1898, %v1900
        %v1902 = vadd.f32 %v1898, %v1901
        %vm1903 = vweird.f32 %v1881
        %vm1904 = vweird.f32 %v1898
        %vm1905 = vmor %vm1903, %vm1904
        %v1906 = vsel %vm1905, %v1898, %v1902
        %v1907 = vand.u32 2147483647, %v1881
        %vm1908 = vcmp.eq.f32.partialorder %v1907, 8.507059e+37
        %v1909 = vand.u32 %v1881, 2147483648
        %v1910 = vor.u32 1.1754944e-38, %v1909
        %v1911 = vsel %vm1908, %v1910, %v1906
        %v1912 = vmul.f32 1.0, %v1911
        %v1913 = vrcp.pop %v1882
        %v1914 = vmul.f32 %v1882, %v1913
        %v1915 = vsub.f32 1.0, %v1914
        %v1916 = vmul.f32 %v1913, %v1915
        %v1917 = vadd.f32 %v1913, %v1916
        %vm1918 = vweird.f32 %v1882
        %vm1919 = vweird.f32 %v1913
        %vm1920 = vmor %vm1918, %vm1919
        %v1921 = vsel %vm1920, %v1913, %v1917
        %v1922 = vand.u32 2147483647, %v1882
        %vm1923 = vcmp.eq.f32.partialorder %v1922, 8.507059e+37
        %v1924 = vand.u32 %v1882, 2147483648
        %v1925 = vor.u32 1.1754944e-38, %v1924
        %v1926 = vsel %vm1923, %v1925, %v1921
        %v1927 = vmul.f32 1.0, %v1926
        %v1928 = vtanh.pop %v1870
        %v1929 = vmul.f32 %v1912, %v1773
        %v1930 = vmul.f32 %v1897, %v1928
        %v1931 = vadd.f32 %v1929, %v1930
        %v1932 = vtanh.pop %v1931
        %v1933 = vmul.f32 %v1927, %v1932
        %v1934 = vadd.f32 %v1933, %v1786
        %s1935 = scalar_lea.vmem %s259, 56
        %1936 = vst [vmem:[%s1935] sm:$0xff] %v1934
        %1937 = vst [vmem:[#allocation2] sm:$0xff] %v1933
        %1938 = vst [vmem:[#allocation3] sm:$0xff] %v1931
      $region48: #{residual_lstm_layer.1} parent=35 // pred_fallthru
        _
      %s1939 = ssub.s32 %s20, 1
      %p1940 = scmp.gt.s32.totalorder %s1939, 0
      %s1941 = scalar_select %p1940, %s1939, 0
      %p1942 = scmp.lt.s32.totalorder %s19, 0
      %s1943 = scalar_select %p1942, %s19, 0
      %p1944 = scmp.lt.s32.totalorder %s1941, 0
      %s1945 = scalar_select %p1944, %s1941, 0
      %s1946 = smul.addr %s1945, 8
      %s1947 = smul.addr %s1943, 8
      %s1948 = sadd.s32 %s1946, %s1947
      %s1949 = smul.addr %s1948, 8
      %s1950 = scalar_lea.vmem %s4, %s1949
      // Predicated region
      $region49: #{residual_lstm_layer.1} parent=35 // pred_check
        %p1951 = pneg %p148
      $region50: #{residual_lstm_layer.1} parent=35 // pred_check_branch
        %1953 = sbr.rel (%p1951) target = $region52
      $region51: #{residual_lstm_layer.1} parent=35 // pred_region
        %s1954 = ssub.s32 %s20, 1
        %p1955 = scmp.gt.s32.totalorder %s1954, 0
        %s1956 = scalar_select %p1955, %s1954, 0
      $region52: #{residual_lstm_layer.1} parent=35 // pred_fallthru
        _
    $region36: #{residual_lstm_layer.1} parent=5 // pred_fallthru
      _
    %p1957 = scmp.le.s32.totalorder 2, %s10
    // Predicated region
    $region53: #{residual_lstm_layer.1} parent=5 // pred_check
      %p1958 = pneg %p1957
    $region54: #{residual_lstm_layer.1} parent=5 // pred_check_branch
      %1960 = sbr.rel (%p1958) target = $region56
    $region55: #{residual_lstm_layer.1} parent=5 // pred_region
      %s1961 = ssub.s32 %s10, 2
      // Predicated region
      $region57: #{residual_lstm_layer.1} parent=55 // pred_check
        %p1962 = pneg %p154
      $region58: #{residual_lstm_layer.1} parent=55 // pred_check_branch
        %1964 = sbr.rel (%p1962) target = $region60
      $region59: #{residual_lstm_layer.1} parent=55 // pred_region
        %s1965 = ssub.s32 %s22, 1
        %p1966 = scmp.gt.s32.totalorder %s1965, 0
        %s1967 = scalar_select %p1966, %s1965, 0
        %p1968 = scmp.lt.s32.totalorder %s21, 0
        %s1969 = scalar_select %p1968, %s21, 0
        %p1970 = scmp.lt.s32.totalorder %s1967, 0
        %s1971 = scalar_select %p1970, %s1967, 0
        %s1972 = smul.addr %s1971, 8
        %s1973 = smul.addr %s1969, 8
        %s1974 = sadd.s32 %s1972, %s1973
        %s1975 = smul.addr %s1974, 8
        %s1976 = scalar_lea.vmem %s4, %s1975
      $region60: #{residual_lstm_layer.1} parent=55 // pred_fallthru
        _
    $region56: #{residual_lstm_layer.1} parent=5 // pred_fallthru
      _
  $region6: #{residual_lstm_layer.1} parent=0 // loop_footer
    %s14 = sadd.s32 1, %s10
  $region7: #{residual_lstm_layer.1} parent=0 // loop_footer_branch
    %9 = sbr.rel target = $region3
  $region8: #{residual_lstm_layer.1} parent=0 // loop_exit
    _

</llo_original>
